<compile_context>
chip_gen: v6e
topology: v6e:2x2x1
jax: 0.10.0
libtpu: 0.0.40
codegen_flags: <defaults>
</compile_context>

<pallas_src>
import functools
import math

import jax
import jax.numpy as jnp
from jax.experimental import pallas as pl
from jax.experimental.pallas import tpu as pltpu

LN_EPS = 1e-5  # nn.LayerNorm default


def _layernorm(x, gamma, beta):
    mean = jnp.mean(x, axis=-1, keepdims=True)
    var = jnp.mean(jnp.square(x - mean), axis=-1, keepdims=True)
    return (x - mean) * jax.lax.rsqrt(var + LN_EPS) * gamma + beta


def _erf(x):
    # Abramowitz & Stegun 7.1.26 (|err| <= 1.5e-7): only exp/mul/add/select, so it lowers
    # cleanly in Mosaic while keeping exact-GELU semantics to float32 precision.
    p = 0.3275911
    a1, a2, a3, a4, a5 = (0.254829592, -0.284496736, 1.421413741,
                          -1.453152027, 1.061405429)
    ax = jnp.abs(x)
    t = 1.0 / (1.0 + p * ax)
    poly = ((((a5 * t + a4) * t + a3) * t + a2) * t + a1) * t
    y = 1.0 - poly * jnp.exp(-ax * ax)
    return jnp.where(x < 0, -y, y)


def _gelu_exact(x):
    # nn.GELU() default (erf form).
    return 0.5 * x * (1.0 + _erf(x * (1.0 / math.sqrt(2.0))))


# ----------------------------- Fused transformer kernel -----------------------------
def transformer_kernel(
    x_ref,
    ln1g_ref, ln1b_ref, wqkv_ref, wo_ref, bo_ref,
    ln2g_ref, ln2b_ref, w1_ref, b1_ref, w2_ref, b2_ref,
    o_ref,
    act_ref, qkv_ref, ctx_ref,
    *, heads, dim_head,
):
    d = pl.program_id(1)
    tb, L, D = act_ref.shape
    inner = heads * dim_head
    scale = dim_head ** (-0.5)

    # First layer for this batch block: load the input into the resident f32 activation.
    @pl.when(d == 0)
    def _():
        act_ref[...] = x_ref[...].astype(jnp.float32)

    x = act_ref[...]                                     # (tb, L, D) f32, carried across layers

    # -------- PreNorm(Attention) + residual --------
    xn = _layernorm(x, ln1g_ref[0, 0], ln1b_ref[0, 0])   # (tb, L, D) f32
    xn_bf = xn.reshape(tb * L, D).astype(jnp.bfloat16)

    # Fused lane-dense QKV projection: one (tb*L, D) @ (D, 3*inner) MXU pass, bf16 in / f32 acc.
    qkv_ref[...] = jnp.dot(
        xn_bf, wqkv_ref[0], preferred_element_type=jnp.float32
    ).reshape(tb, L, 3 * inner)

    # Attention core is inherently per-head; q/k/v are static lane slices of the qkv scratch.
    for h in range(heads):
        q = qkv_ref[:, :, h * dim_head:(h + 1) * dim_head] * scale          # (tb, L, Dh) f32
        k = qkv_ref[:, :, inner + h * dim_head:inner + (h + 1) * dim_head]
        v = qkv_ref[:, :, 2 * inner + h * dim_head:2 * inner + (h + 1) * dim_head]

        dots = jnp.einsum("bqe,bke->bqk", q.astype(jnp.bfloat16),
                          k.astype(jnp.bfloat16),
                          preferred_element_type=jnp.float32)                # (tb, L, L) f32
        m = jnp.max(dots, axis=-1, keepdims=True)
        p = jnp.exp(dots - m)
        attn = p * pl.reciprocal(jnp.sum(p, axis=-1, keepdims=True), approx=True)

        # Write this head's context into its lane-dense slot (== concat over heads).
        ctx_ref[:, :, h * dim_head:(h + 1) * dim_head] = jnp.einsum(
            "bqk,bke->bqe", attn.astype(jnp.bfloat16), v.astype(jnp.bfloat16),
            preferred_element_type=jnp.float32)

    # Fused lane-dense output projection: (tb*L, inner) @ (inner, D), full K in one pass.
    y = jnp.dot(ctx_ref[...].reshape(tb * L, inner).astype(jnp.bfloat16),
                wo_ref[0], preferred_element_type=jnp.float32)               # (tb*L, D)
    x = x + y.reshape(tb, L, D) + bo_ref[0, 0]

    # -------- PreNorm(FeedForward) + residual --------
    xn2 = _layernorm(x, ln2g_ref[0, 0], ln2b_ref[0, 0])
    hmid = jnp.dot(xn2.reshape(tb * L, D).astype(jnp.bfloat16), w1_ref[0],
                   preferred_element_type=jnp.float32) + b1_ref[0, 0]        # (tb*L, F)
    hmid = _gelu_exact(hmid)
    y2 = jnp.dot(hmid.astype(jnp.bfloat16), w2_ref[0],
                 preferred_element_type=jnp.float32) + b2_ref[0, 0]          # (tb*L, D)
    x = x + y2.reshape(tb, L, D)

    act_ref[...] = x

    @pl.when(d == pl.num_programs(1) - 1)
    def _():
        o_ref[...] = x.astype(o_ref.dtype)


def transformer_forward(x, params, *, heads, dim_head, block_b=None):
    """x: (B, L, D). params: list (len=depth) of dicts in PyTorch-equivalent layout."""
    B, L, D = x.shape
    depth = len(params)
    inner = heads * dim_head
    mlp_dim = params[0]["w1"].shape[1]

    # Batch blocking: reuse each layer's weight DMA across block_b examples.
    if block_b is None:
        block_b = min(B, 8)
    while B % block_b:
        block_b -= 1

    stack_w = lambda name: jnp.stack([p[name] for p in params]).astype(jnp.bfloat16)
    stack_v = lambda name: jnp.stack([p[name] for p in params]).astype(jnp.float32)[:, None, :]

    # Lane-dense bf16 weights (original PyTorch layouts, no per-head re-layout).
    wqkv = stack_w("wqkv")                                # (depth, D, 3*inner)
    wo = stack_w("wo")                                    # (depth, inner, D)
    w1 = stack_w("w1")                                    # (depth, D, mlp_dim)
    w2 = stack_w("w2")                                    # (depth, mlp_dim, D)
    # f32 LayerNorm params / biases, shaped (depth, 1, n) so last-two block dims == full dims.
    ln1g, ln1b = stack_v("ln1_g"), stack_v("ln1_b")
    bo = stack_v("bo")
    ln2g, ln2b = stack_v("ln2_g"), stack_v("ln2_b")
    b1, b2 = stack_v("b1"), stack_v("b2")

    vec_spec = lambda n: pl.BlockSpec((1, 1, n), lambda b, d: (d, 0, 0))
    mat_spec = lambda r, c: pl.BlockSpec((1, r, c), lambda b, d: (d, 0, 0))

    kern = functools.partial(transformer_kernel, heads=heads, dim_head=dim_head)
    return pl.pallas_call(
        kern,
        out_shape=jax.ShapeDtypeStruct((B, L, D), x.dtype),
        grid_spec=pltpu.PrefetchScalarGridSpec(
            num_scalar_prefetch=0,
            grid=(B // block_b, depth),                    # depth innermost ("arbitrary")
            in_specs=[
                pl.BlockSpec((block_b, L, D), lambda b, d: (b, 0, 0)),   # x
                vec_spec(D), vec_spec(D),                                # ln1 gamma/beta
                mat_spec(D, 3 * inner),                                  # wqkv (lane-dense)
                mat_spec(inner, D),                                      # wo   (lane-dense)
                vec_spec(D),                                             # bo
                vec_spec(D), vec_spec(D),                                # ln2 gamma/beta
                mat_spec(D, mlp_dim),                                    # w1
                vec_spec(mlp_dim),                                       # b1
                mat_spec(mlp_dim, D),                                    # w2
                vec_spec(D),                                             # b2
            ],
            out_specs=pl.BlockSpec((block_b, L, D), lambda b, d: (b, 0, 0)),
            scratch_shapes=[
                pltpu.VMEM((block_b, L, D), jnp.float32),          # resident activation
                pltpu.VMEM((block_b, L, 3 * inner), jnp.float32),  # fused qkv result
                pltpu.VMEM((block_b, L, inner), jnp.float32),      # concatenated head context
            ],
        ),
        compiler_params=pltpu.CompilerParams(
            dimension_semantics=("parallel", "arbitrary"),
            # Explicit VMEM budget (default scoped limit is too small for realistic ViT
            # layers); kept below v7x's 64 MiB physical VMEM.
            vmem_limit_bytes=56 * 1024 * 1024,
        ),
    )(x, ln1g, ln1b, wqkv, wo, bo, ln2g, ln2b, w1, b1, w2, b2)


# ----------------------------- Parameter init + pure-JAX reference -------------------------
def init_transformer_params(key, *, dim, depth, heads, dim_head, mlp_dim):
    inner = heads * dim_head
    params = []
    for _ in range(depth):
        key, *ks = jax.random.split(key, 12)   # 11 sub-keys (ks[0]..ks[10])
        params.append({
            # PreNorm(Attention)
            "ln1_g": 1.0 + 0.1 * jax.random.normal(ks[0], (dim,), jnp.float32),
            "ln1_b": 0.1 * jax.random.normal(ks[1], (dim,), jnp.float32),
            "wqkv": 0.05 * jax.random.normal(ks[2], (dim, 3 * inner), jnp.float32),
            "wo": 0.05 * jax.random.normal(ks[3], (inner, dim), jnp.float32),
            "bo": 0.1 * jax.random.normal(ks[4], (dim,), jnp.float32),
            # PreNorm(FeedForward)
            "ln2_g": 1.0 + 0.1 * jax.random.normal(ks[5], (dim,), jnp.float32),
            "ln2_b": 0.1 * jax.random.normal(ks[6], (dim,), jnp.float32),
            "w1": 0.05 * jax.random.normal(ks[7], (dim, mlp_dim), jnp.float32),
            "b1": 0.1 * jax.random.normal(ks[8], (mlp_dim,), jnp.float32),
            "w2": 0.05 * jax.random.normal(ks[9], (mlp_dim, dim), jnp.float32),
            "b2": 0.1 * jax.random.normal(ks[10], (dim,), jnp.float32),
        })
    return params


def transformer_reference(x, params, *, heads, dim_head):
    """Pure-JAX transcription of the PyTorch forward (dropout=0)."""
    B, L, D = x.shape
    inner = heads * dim_head
    scale = dim_head ** (-0.5)
    for p in params:
        xn = _layernorm(x, p["ln1_g"], p["ln1_b"])
        qkv = xn @ p["wqkv"]
        qkv = qkv.reshape(B, L, 3, heads, dim_head).transpose(2, 0, 3, 1, 4)
        q, k, v = qkv[0], qkv[1], qkv[2]
        dots = jnp.einsum("bhqe,bhke->bhqk", q, k) * scale
        attn = jax.nn.softmax(dots, axis=-1)
        out = jnp.einsum("bhqk,bhke->bhqe", attn, v)
        out = out.transpose(0, 2, 1, 3).reshape(B, L, inner)
        x = out @ p["wo"] + p["bo"] + x
        xn2 = _layernorm(x, p["ln2_g"], p["ln2_b"])
        h = _gelu_exact(xn2 @ p["w1"] + p["b1"])
        x = h @ p["w2"] + p["b2"] + x
    return x


if __name__ == "__main__":
    # Small shapes implied by Transformer(dim, depth, heads, dim_head, mlp_dim)
    B, L = 2, 8
    dim, depth, heads, dim_head, mlp_dim = 32, 2, 4, 16, 64

    key = jax.random.PRNGKey(0)
    kx, kp = jax.random.split(key)
    x = jax.random.normal(kx, (B, L, dim), jnp.float32)
    params = init_transformer_params(
        kp, dim=dim, depth=depth, heads=heads, dim_head=dim_head, mlp_dim=mlp_dim
    )

    out = transformer_forward(x, params, heads=heads, dim_head=dim_head)
    out = jax.block_until_ready(out)

    ref = transformer_reference(x, params, heads=heads, dim_head=dim_head)
    assert out.shape == (B, L, dim)
    assert bool(jnp.all(jnp.isfinite(out)))
    max_err = float(jnp.max(jnp.abs(out - ref)))
    assert bool(jnp.allclose(out, ref, rtol=2e-2, atol=2e-2)), f"max abs err {max_err}"
    print("KERNEL_OK")
</pallas_src>

<mosaic_0001>
module attributes {stable_mosaic.version = 11 : i64} {
  func.func @transformer_kernel(%arg0: i32, %arg1: i32, %arg2: memref<2x8x32xf32, #tpu.memory_space<vmem>>, %arg3: memref<1x1x32xf32, #tpu.memory_space<vmem>>, %arg4: memref<1x1x32xf32, #tpu.memory_space<vmem>>, %arg5: memref<1x32x192xbf16, #tpu.memory_space<vmem>>, %arg6: memref<1x64x32xbf16, #tpu.memory_space<vmem>>, %arg7: memref<1x1x32xf32, #tpu.memory_space<vmem>>, %arg8: memref<1x1x32xf32, #tpu.memory_space<vmem>>, %arg9: memref<1x1x32xf32, #tpu.memory_space<vmem>>, %arg10: memref<1x32x64xbf16, #tpu.memory_space<vmem>>, %arg11: memref<1x1x64xf32, #tpu.memory_space<vmem>>, %arg12: memref<1x64x32xbf16, #tpu.memory_space<vmem>>, %arg13: memref<1x1x32xf32, #tpu.memory_space<vmem>>, %arg14: memref<2x8x32xf32, #tpu.memory_space<vmem>>, %arg15: memref<2x8x32xf32, #tpu.memory_space<vmem>>, %arg16: memref<2x8x192xf32, #tpu.memory_space<vmem>>, %arg17: memref<2x8x64xf32, #tpu.memory_space<vmem>>) attributes {dimension_semantics = [#tpu.dimension_semantics<parallel>, #tpu.dimension_semantics<arbitrary>], iteration_bounds = array<i64: 1, 2>, scalar_prefetch = 0 : i64, scratch_operands = 3 : i64, tpu.core_type = #tpu.core_type<tc>, window_params = [{transform_indices = @transform_0, window_bounds = array<i64: 2, 8, 32>}, {transform_indices = @transform_1, window_bounds = array<i64: 1, 1, 32>}, {transform_indices = @transform_2, window_bounds = array<i64: 1, 1, 32>}, {transform_indices = @transform_3, window_bounds = array<i64: 1, 32, 192>}, {transform_indices = @transform_4, window_bounds = array<i64: 1, 64, 32>}, {transform_indices = @transform_5, window_bounds = array<i64: 1, 1, 32>}, {transform_indices = @transform_6, window_bounds = array<i64: 1, 1, 32>}, {transform_indices = @transform_7, window_bounds = array<i64: 1, 1, 32>}, {transform_indices = @transform_8, window_bounds = array<i64: 1, 32, 64>}, {transform_indices = @transform_9, window_bounds = array<i64: 1, 1, 64>}, {transform_indices = @transform_10, window_bounds = array<i64: 1, 64, 32>}, {transform_indices = @transform_11, window_bounds = array<i64: 1, 1, 32>}, {transform_indices = @transform_12, window_bounds = array<i64: 2, 8, 32>}]} {
    %c0_i32 = arith.constant 0 : i32
    %0 = arith.cmpi eq, %arg1, %c0_i32 : i32
    %1 = arith.extui %0 : i1 to i32
    %c0_i32_0 = arith.constant 0 : i32
    %2 = arith.cmpi ne, %1, %c0_i32_0 : i32
    scf.if %2 {
      %c0_131 = arith.constant 0 : index
      %c0_132 = arith.constant 0 : index
      %c0_133 = arith.constant 0 : index
      %233 = vector.load %arg2[%c0_131, %c0_132, %c0_133] : memref<2x8x32xf32, #tpu.memory_space<vmem>>, vector<2x8x32xf32>
      %c0_134 = arith.constant 0 : index
      %c0_135 = arith.constant 0 : index
      %c0_136 = arith.constant 0 : index
      %234 = vector.load %arg15[%c0_134, %c0_135, %c0_136] : memref<2x8x32xf32, #tpu.memory_space<vmem>>, vector<2x8x32xf32>
      tpu.vector_store %arg15[%c0_134, %c0_135, %c0_136], %233 {strides = array<i32>} : memref<2x8x32xf32, #tpu.memory_space<vmem>>, vector<2x8x32xf32>,
    } else {
    }
    %c0 = arith.constant 0 : index
    %c0_1 = arith.constant 0 : index
    %c0_2 = arith.constant 0 : index
    %3 = vector.load %arg15[%c0, %c0_1, %c0_2] : memref<2x8x32xf32, #tpu.memory_space<vmem>>, vector<2x8x32xf32>
    %c0_3 = arith.constant 0 : index
    %c0_4 = arith.constant 0 : index
    %c0_5 = arith.constant 0 : index
    %4 = vector.load %arg3[%c0_3, %c0_4, %c0_5] : memref<1x1x32xf32, #tpu.memory_space<vmem>>, vector<1x1x32xf32>
    %5 = vector.shape_cast %4 : vector<1x1x32xf32> to vector<32xf32>
    %c0_6 = arith.constant 0 : index
    %c0_7 = arith.constant 0 : index
    %c0_8 = arith.constant 0 : index
    %6 = vector.load %arg4[%c0_6, %c0_7, %c0_8] : memref<1x1x32xf32, #tpu.memory_space<vmem>>, vector<1x1x32xf32>
    %7 = vector.shape_cast %6 : vector<1x1x32xf32> to vector<32xf32>
    %cst = arith.constant dense<0.000000e+00> : vector<2x8xf32>
    %8 = vector.multi_reduction <add>, %3, %cst [2] : vector<2x8x32xf32> to vector<2x8xf32>
    %9 = vector.shape_cast %8 : vector<2x8xf32> to vector<2x8x1xf32>
    %cst_9 = arith.constant 3.200000e+01 : f32
    %10 = vector.broadcast %cst_9 : f32 to vector<2x8x1xf32>
    %11 = arith.divf %9, %10 : vector<2x8x1xf32>
    %12 = vector.broadcast %11 : vector<2x8x1xf32> to vector<2x8x32xf32>
    %13 = arith.subf %3, %12 : vector<2x8x32xf32>
    %14 = arith.mulf %13, %13 : vector<2x8x32xf32>
    %cst_10 = arith.constant dense<0.000000e+00> : vector<2x8xf32>
    %15 = vector.multi_reduction <add>, %14, %cst_10 [2] : vector<2x8x32xf32> to vector<2x8xf32>
    %16 = vector.shape_cast %15 : vector<2x8xf32> to vector<2x8x1xf32>
    %cst_11 = arith.constant 3.200000e+01 : f32
    %17 = vector.broadcast %cst_11 : f32 to vector<2x8x1xf32>
    %18 = arith.divf %16, %17 : vector<2x8x1xf32>
    %19 = vector.broadcast %11 : vector<2x8x1xf32> to vector<2x8x32xf32>
    %20 = arith.subf %3, %19 : vector<2x8x32xf32>
    %cst_12 = arith.constant 9.99999974E-6 : f32
    %21 = vector.broadcast %cst_12 : f32 to vector<2x8x1xf32>
    %22 = arith.addf %18, %21 : vector<2x8x1xf32>
    %23 = math.rsqrt %22 : vector<2x8x1xf32>
    %24 = vector.broadcast %23 : vector<2x8x1xf32> to vector<2x8x32xf32>
    %25 = arith.mulf %20, %24 : vector<2x8x32xf32>
    %26 = vector.shape_cast %5 : vector<32xf32> to vector<1x1x32xf32>
    %27 = vector.broadcast %26 : vector<1x1x32xf32> to vector<2x8x32xf32>
    %28 = arith.mulf %25, %27 : vector<2x8x32xf32>
    %29 = vector.shape_cast %7 : vector<32xf32> to vector<1x1x32xf32>
    %30 = vector.broadcast %29 : vector<1x1x32xf32> to vector<2x8x32xf32>
    %31 = arith.addf %28, %30 : vector<2x8x32xf32>
    %32 = vector.shape_cast %31 : vector<2x8x32xf32> to vector<16x32xf32>
    %33 = arith.truncf %32 : vector<16x32xf32> to vector<16x32xbf16>
    %c0_13 = arith.constant 0 : index
    %c0_14 = arith.constant 0 : index
    %c0_15 = arith.constant 0 : index
    %34 = vector.load %arg5[%c0_13, %c0_14, %c0_15] : memref<1x32x192xbf16, #tpu.memory_space<vmem>>, vector<1x32x192xbf16>
    %35 = vector.shape_cast %34 : vector<1x32x192xbf16> to vector<32x192xbf16>
    %cst_16 = arith.constant dense<0.000000e+00> : vector<16x192xf32>
    %36 = tpu.matmul %33, %35, %cst_16 {dimension_numbers = #tpu.dot_dimension_numbers<[1], [0], [0], [1], [0, 0, 1, 1], [], []>} : vector<16x32xbf16>, vector<32x192xbf16>, vector<16x192xf32> -> vector<16x192xf32>
    %37 = vector.shape_cast %36 : vector<16x192xf32> to vector<2x8x192xf32>
    %c0_17 = arith.constant 0 : index
    %c0_18 = arith.constant 0 : index
    %c0_19 = arith.constant 0 : index
    %38 = vector.load %arg16[%c0_17, %c0_18, %c0_19] : memref<2x8x192xf32, #tpu.memory_space<vmem>>, vector<2x8x192xf32>
    tpu.vector_store %arg16[%c0_17, %c0_18, %c0_19], %37 {strides = array<i32>} : memref<2x8x192xf32, #tpu.memory_space<vmem>>, vector<2x8x192xf32>,
    %c0_20 = arith.constant 0 : index
    %c0_21 = arith.constant 0 : index
    %c0_22 = arith.constant 0 : index
    %39 = vector.load %arg16[%c0_20, %c0_21, %c0_22] : memref<2x8x192xf32, #tpu.memory_space<vmem>>, vector<2x8x16xf32>
    %cst_23 = arith.constant 2.500000e-01 : f32
    %40 = vector.broadcast %cst_23 : f32 to vector<2x8x16xf32>
    %41 = arith.mulf %39, %40 : vector<2x8x16xf32>
    %c0_24 = arith.constant 0 : index
    %c0_25 = arith.constant 0 : index
    %c64 = arith.constant 64 : index
    %42 = vector.load %arg16[%c0_24, %c0_25, %c64] : memref<2x8x192xf32, #tpu.memory_space<vmem>>, vector<2x8x16xf32>
    %c0_26 = arith.constant 0 : index
    %c0_27 = arith.constant 0 : index
    %c128 = arith.constant 128 : index
    %43 = vector.load %arg16[%c0_26, %c0_27, %c128] : memref<2x8x192xf32, #tpu.memory_space<vmem>>, vector<2x8x16xf32>
    %44 = arith.truncf %41 : vector<2x8x16xf32> to vector<2x8x16xbf16>
    %45 = arith.truncf %42 : vector<2x8x16xf32> to vector<2x8x16xbf16>
    "tpu.trace_start"() <{level = 10 : i32, message = "bqe,bke->bqk"}> : () -> ()
    %cst_28 = arith.constant dense<0.000000e+00> : vector<2x8x8xf32>
    %46 = tpu.matmul %44, %45, %cst_28 {dimension_numbers = #tpu.dot_dimension_numbers<[2], [2], [1], [1], [0, 0, 0, 1, 1, 1], [0], [0]>} : vector<2x8x16xbf16>, vector<2x8x16xbf16>, vector<2x8x8xf32> -> vector<2x8x8xf32>
    "tpu.trace_stop"() : () -> ()
    %cst_29 = arith.constant dense<0xFF800000> : vector<2x8xf32>
    %47 = vector.multi_reduction <maximumf>, %46, %cst_29 [2] : vector<2x8x8xf32> to vector<2x8xf32>
    %48 = vector.shape_cast %47 : vector<2x8xf32> to vector<2x8x1xf32>
    %49 = vector.broadcast %48 : vector<2x8x1xf32> to vector<2x8x8xf32>
    %50 = arith.subf %46, %49 : vector<2x8x8xf32>
    %51 = math.exp %50 : vector<2x8x8xf32>
    %cst_30 = arith.constant dense<0.000000e+00> : vector<2x8xf32>
    %52 = vector.multi_reduction <add>, %51, %cst_30 [2] : vector<2x8x8xf32> to vector<2x8xf32>
    %53 = vector.shape_cast %52 : vector<2x8xf32> to vector<2x8x1xf32>
    %54 = tpu.reciprocal %53 {approx = true} : vector<2x8x1xf32> -> vector<2x8x1xf32>
    %55 = vector.broadcast %54 : vector<2x8x1xf32> to vector<2x8x8xf32>
    %56 = arith.mulf %51, %55 : vector<2x8x8xf32>
    %57 = arith.truncf %56 : vector<2x8x8xf32> to vector<2x8x8xbf16>
    %58 = arith.truncf %43 : vector<2x8x16xf32> to vector<2x8x16xbf16>
    "tpu.trace_start"() <{level = 10 : i32, message = "bqk,bke->bqe"}> : () -> ()
    %cst_31 = arith.constant dense<0.000000e+00> : vector<2x8x16xf32>
    %59 = tpu.matmul %57, %58, %cst_31 {dimension_numbers = #tpu.dot_dimension_numbers<[2], [1], [1], [2], [0, 0, 0, 1, 1, 2], [0], [0]>} : vector<2x8x8xbf16>, vector<2x8x16xbf16>, vector<2x8x16xf32> -> vector<2x8x16xf32>
    "tpu.trace_stop"() : () -> ()
    %c0_32 = arith.constant 0 : index
    %c0_33 = arith.constant 0 : index
    %c0_34 = arith.constant 0 : index
    %60 = vector.load %arg17[%c0_32, %c0_33, %c0_34] : memref<2x8x64xf32, #tpu.memory_space<vmem>>, vector<2x8x16xf32>
    tpu.vector_store %arg17[%c0_32, %c0_33, %c0_34], %59 {strides = array<i32>} : memref<2x8x64xf32, #tpu.memory_space<vmem>>, vector<2x8x16xf32>,
    %c0_35 = arith.constant 0 : index
    %c0_36 = arith.constant 0 : index
    %c16 = arith.constant 16 : index
    %61 = vector.load %arg16[%c0_35, %c0_36, %c16] : memref<2x8x192xf32, #tpu.memory_space<vmem>>, vector<2x8x16xf32>
    %cst_37 = arith.constant 2.500000e-01 : f32
    %62 = vector.broadcast %cst_37 : f32 to vector<2x8x16xf32>
    %63 = arith.mulf %61, %62 : vector<2x8x16xf32>
    %c0_38 = arith.constant 0 : index
    %c0_39 = arith.constant 0 : index
    %c80 = arith.constant 80 : index
    %64 = vector.load %arg16[%c0_38, %c0_39, %c80] : memref<2x8x192xf32, #tpu.memory_space<vmem>>, vector<2x8x16xf32>
    %c0_40 = arith.constant 0 : index
    %c0_41 = arith.constant 0 : index
    %c144 = arith.constant 144 : index
    %65 = vector.load %arg16[%c0_40, %c0_41, %c144] : memref<2x8x192xf32, #tpu.memory_space<vmem>>, vector<2x8x16xf32>
    %66 = arith.truncf %63 : vector<2x8x16xf32> to vector<2x8x16xbf16>
    %67 = arith.truncf %64 : vector<2x8x16xf32> to vector<2x8x16xbf16>
    "tpu.trace_start"() <{level = 10 : i32, message = "bqe,bke->bqk"}> : () -> ()
    %cst_42 = arith.constant dense<0.000000e+00> : vector<2x8x8xf32>
    %68 = tpu.matmul %66, %67, %cst_42 {dimension_numbers = #tpu.dot_dimension_numbers<[2], [2], [1], [1], [0, 0, 0, 1, 1, 1], [0], [0]>} : vector<2x8x16xbf16>, vector<2x8x16xbf16>, vector<2x8x8xf32> -> vector<2x8x8xf32>
    "tpu.trace_stop"() : () -> ()
    %cst_43 = arith.constant dense<0xFF800000> : vector<2x8xf32>
    %69 = vector.multi_reduction <maximumf>, %68, %cst_43 [2] : vector<2x8x8xf32> to vector<2x8xf32>
    %70 = vector.shape_cast %69 : vector<2x8xf32> to vector<2x8x1xf32>
    %71 = vector.broadcast %70 : vector<2x8x1xf32> to vector<2x8x8xf32>
    %72 = arith.subf %68, %71 : vector<2x8x8xf32>
    %73 = math.exp %72 : vector<2x8x8xf32>
    %cst_44 = arith.constant dense<0.000000e+00> : vector<2x8xf32>
    %74 = vector.multi_reduction <add>, %73, %cst_44 [2] : vector<2x8x8xf32> to vector<2x8xf32>
    %75 = vector.shape_cast %74 : vector<2x8xf32> to vector<2x8x1xf32>
    %76 = tpu.reciprocal %75 {approx = true} : vector<2x8x1xf32> -> vector<2x8x1xf32>
    %77 = vector.broadcast %76 : vector<2x8x1xf32> to vector<2x8x8xf32>
    %78 = arith.mulf %73, %77 : vector<2x8x8xf32>
    %79 = arith.truncf %78 : vector<2x8x8xf32> to vector<2x8x8xbf16>
    %80 = arith.truncf %65 : vector<2x8x16xf32> to vector<2x8x16xbf16>
    "tpu.trace_start"() <{level = 10 : i32, message = "bqk,bke->bqe"}> : () -> ()
    %cst_45 = arith.constant dense<0.000000e+00> : vector<2x8x16xf32>
    %81 = tpu.matmul %79, %80, %cst_45 {dimension_numbers = #tpu.dot_dimension_numbers<[2], [1], [1], [2], [0, 0, 0, 1, 1, 2], [0], [0]>} : vector<2x8x8xbf16>, vector<2x8x16xbf16>, vector<2x8x16xf32> -> vector<2x8x16xf32>
    "tpu.trace_stop"() : () -> ()
    %c0_46 = arith.constant 0 : index
    %c0_47 = arith.constant 0 : index
    %c16_48 = arith.constant 16 : index
    %82 = vector.load %arg17[%c0_46, %c0_47, %c16_48] : memref<2x8x64xf32, #tpu.memory_space<vmem>>, vector<2x8x16xf32>
    tpu.vector_store %arg17[%c0_46, %c0_47, %c16_48], %81 {strides = array<i32>} : memref<2x8x64xf32, #tpu.memory_space<vmem>>, vector<2x8x16xf32>,
    %c0_49 = arith.constant 0 : index
    %c0_50 = arith.constant 0 : index
    %c32 = arith.constant 32 : index
    %83 = vector.load %arg16[%c0_49, %c0_50, %c32] : memref<2x8x192xf32, #tpu.memory_space<vmem>>, vector<2x8x16xf32>
    %cst_51 = arith.constant 2.500000e-01 : f32
    %84 = vector.broadcast %cst_51 : f32 to vector<2x8x16xf32>
    %85 = arith.mulf %83, %84 : vector<2x8x16xf32>
    %c0_52 = arith.constant 0 : index
    %c0_53 = arith.constant 0 : index
    %c96 = arith.constant 96 : index
    %86 = vector.load %arg16[%c0_52, %c0_53, %c96] : memref<2x8x192xf32, #tpu.memory_space<vmem>>, vector<2x8x16xf32>
    %c0_54 = arith.constant 0 : index
    %c0_55 = arith.constant 0 : index
    %c160 = arith.constant 160 : index
    %87 = vector.load %arg16[%c0_54, %c0_55, %c160] : memref<2x8x192xf32, #tpu.memory_space<vmem>>, vector<2x8x16xf32>
    %88 = arith.truncf %85 : vector<2x8x16xf32> to vector<2x8x16xbf16>
    %89 = arith.truncf %86 : vector<2x8x16xf32> to vector<2x8x16xbf16>
    "tpu.trace_start"() <{level = 10 : i32, message = "bqe,bke->bqk"}> : () -> ()
    %cst_56 = arith.constant dense<0.000000e+00> : vector<2x8x8xf32>
    %90 = tpu.matmul %88, %89, %cst_56 {dimension_numbers = #tpu.dot_dimension_numbers<[2], [2], [1], [1], [0, 0, 0, 1, 1, 1], [0], [0]>} : vector<2x8x16xbf16>, vector<2x8x16xbf16>, vector<2x8x8xf32> -> vector<2x8x8xf32>
    "tpu.trace_stop"() : () -> ()
    %cst_57 = arith.constant dense<0xFF800000> : vector<2x8xf32>
    %91 = vector.multi_reduction <maximumf>, %90, %cst_57 [2] : vector<2x8x8xf32> to vector<2x8xf32>
    %92 = vector.shape_cast %91 : vector<2x8xf32> to vector<2x8x1xf32>
    %93 = vector.broadcast %92 : vector<2x8x1xf32> to vector<2x8x8xf32>
    %94 = arith.subf %90, %93 : vector<2x8x8xf32>
    %95 = math.exp %94 : vector<2x8x8xf32>
    %cst_58 = arith.constant dense<0.000000e+00> : vector<2x8xf32>
    %96 = vector.multi_reduction <add>, %95, %cst_58 [2] : vector<2x8x8xf32> to vector<2x8xf32>
    %97 = vector.shape_cast %96 : vector<2x8xf32> to vector<2x8x1xf32>
    %98 = tpu.reciprocal %97 {approx = true} : vector<2x8x1xf32> -> vector<2x8x1xf32>
    %99 = vector.broadcast %98 : vector<2x8x1xf32> to vector<2x8x8xf32>
    %100 = arith.mulf %95, %99 : vector<2x8x8xf32>
    %101 = arith.truncf %100 : vector<2x8x8xf32> to vector<2x8x8xbf16>
    %102 = arith.truncf %87 : vector<2x8x16xf32> to vector<2x8x16xbf16>
    "tpu.trace_start"() <{level = 10 : i32, message = "bqk,bke->bqe"}> : () -> ()
    %cst_59 = arith.constant dense<0.000000e+00> : vector<2x8x16xf32>
    %103 = tpu.matmul %101, %102, %cst_59 {dimension_numbers = #tpu.dot_dimension_numbers<[2], [1], [1], [2], [0, 0, 0, 1, 1, 2], [0], [0]>} : vector<2x8x8xbf16>, vector<2x8x16xbf16>, vector<2x8x16xf32> -> vector<2x8x16xf32>
    "tpu.trace_stop"() : () -> ()
    %c0_60 = arith.constant 0 : index
    %c0_61 = arith.constant 0 : index
    %c32_62 = arith.constant 32 : index
    %104 = vector.load %arg17[%c0_60, %c0_61, %c32_62] : memref<2x8x64xf32, #tpu.memory_space<vmem>>, vector<2x8x16xf32>
    tpu.vector_store %arg17[%c0_60, %c0_61, %c32_62], %103 {strides = array<i32>} : memref<2x8x64xf32, #tpu.memory_space<vmem>>, vector<2x8x16xf32>,
    %c0_63 = arith.constant 0 : index
    %c0_64 = arith.constant 0 : index
    %c48 = arith.constant 48 : index
    %105 = vector.load %arg16[%c0_63, %c0_64, %c48] : memref<2x8x192xf32, #tpu.memory_space<vmem>>, vector<2x8x16xf32>
    %cst_65 = arith.constant 2.500000e-01 : f32
    %106 = vector.broadcast %cst_65 : f32 to vector<2x8x16xf32>
    %107 = arith.mulf %105, %106 : vector<2x8x16xf32>
    %c0_66 = arith.constant 0 : index
    %c0_67 = arith.constant 0 : index
    %c112 = arith.constant 112 : index
    %108 = vector.load %arg16[%c0_66, %c0_67, %c112] : memref<2x8x192xf32, #tpu.memory_space<vmem>>, vector<2x8x16xf32>
    %c0_68 = arith.constant 0 : index
    %c0_69 = arith.constant 0 : index
    %c176 = arith.constant 176 : index
    %109 = vector.load %arg16[%c0_68, %c0_69, %c176] : memref<2x8x192xf32, #tpu.memory_space<vmem>>, vector<2x8x16xf32>
    %110 = arith.truncf %107 : vector<2x8x16xf32> to vector<2x8x16xbf16>
    %111 = arith.truncf %108 : vector<2x8x16xf32> to vector<2x8x16xbf16>
    "tpu.trace_start"() <{level = 10 : i32, message = "bqe,bke->bqk"}> : () -> ()
    %cst_70 = arith.constant dense<0.000000e+00> : vector<2x8x8xf32>
    %112 = tpu.matmul %110, %111, %cst_70 {dimension_numbers = #tpu.dot_dimension_numbers<[2], [2], [1], [1], [0, 0, 0, 1, 1, 1], [0], [0]>} : vector<2x8x16xbf16>, vector<2x8x16xbf16>, vector<2x8x8xf32> -> vector<2x8x8xf32>
    "tpu.trace_stop"() : () -> ()
    %cst_71 = arith.constant dense<0xFF800000> : vector<2x8xf32>
    %113 = vector.multi_reduction <maximumf>, %112, %cst_71 [2] : vector<2x8x8xf32> to vector<2x8xf32>
    %114 = vector.shape_cast %113 : vector<2x8xf32> to vector<2x8x1xf32>
    %115 = vector.broadcast %114 : vector<2x8x1xf32> to vector<2x8x8xf32>
    %116 = arith.subf %112, %115 : vector<2x8x8xf32>
    %117 = math.exp %116 : vector<2x8x8xf32>
    %cst_72 = arith.constant dense<0.000000e+00> : vector<2x8xf32>
    %118 = vector.multi_reduction <add>, %117, %cst_72 [2] : vector<2x8x8xf32> to vector<2x8xf32>
    %119 = vector.shape_cast %118 : vector<2x8xf32> to vector<2x8x1xf32>
    %120 = tpu.reciprocal %119 {approx = true} : vector<2x8x1xf32> -> vector<2x8x1xf32>
    %121 = vector.broadcast %120 : vector<2x8x1xf32> to vector<2x8x8xf32>
    %122 = arith.mulf %117, %121 : vector<2x8x8xf32>
    %123 = arith.truncf %122 : vector<2x8x8xf32> to vector<2x8x8xbf16>
    %124 = arith.truncf %109 : vector<2x8x16xf32> to vector<2x8x16xbf16>
    "tpu.trace_start"() <{level = 10 : i32, message = "bqk,bke->bqe"}> : () -> ()
    %cst_73 = arith.constant dense<0.000000e+00> : vector<2x8x16xf32>
    %125 = tpu.matmul %123, %124, %cst_73 {dimension_numbers = #tpu.dot_dimension_numbers<[2], [1], [1], [2], [0, 0, 0, 1, 1, 2], [0], [0]>} : vector<2x8x8xbf16>, vector<2x8x16xbf16>, vector<2x8x16xf32> -> vector<2x8x16xf32>
    "tpu.trace_stop"() : () -> ()
    %c0_74 = arith.constant 0 : index
    %c0_75 = arith.constant 0 : index
    %c48_76 = arith.constant 48 : index
    %126 = vector.load %arg17[%c0_74, %c0_75, %c48_76] : memref<2x8x64xf32, #tpu.memory_space<vmem>>, vector<2x8x16xf32>
    tpu.vector_store %arg17[%c0_74, %c0_75, %c48_76], %125 {strides = array<i32>} : memref<2x8x64xf32, #tpu.memory_space<vmem>>, vector<2x8x16xf32>,
    %c0_77 = arith.constant 0 : index
    %c0_78 = arith.constant 0 : index
    %c0_79 = arith.constant 0 : index
    %127 = vector.load %arg17[%c0_77, %c0_78, %c0_79] : memref<2x8x64xf32, #tpu.memory_space<vmem>>, vector<2x8x64xf32>
    %128 = vector.shape_cast %127 : vector<2x8x64xf32> to vector<16x64xf32>
    %129 = arith.truncf %128 : vector<16x64xf32> to vector<16x64xbf16>
    %c0_80 = arith.constant 0 : index
    %c0_81 = arith.constant 0 : index
    %c0_82 = arith.constant 0 : index
    %130 = vector.load %arg6[%c0_80, %c0_81, %c0_82] : memref<1x64x32xbf16, #tpu.memory_space<vmem>>, vector<1x64x32xbf16>
    %131 = vector.shape_cast %130 : vector<1x64x32xbf16> to vector<64x32xbf16>
    %cst_83 = arith.constant dense<0.000000e+00> : vector<16x32xf32>
    %132 = tpu.matmul %129, %131, %cst_83 {dimension_numbers = #tpu.dot_dimension_numbers<[1], [0], [0], [1], [0, 0, 1, 1], [], []>} : vector<16x64xbf16>, vector<64x32xbf16>, vector<16x32xf32> -> vector<16x32xf32>
    %133 = vector.shape_cast %132 : vector<16x32xf32> to vector<2x8x32xf32>
    %134 = arith.addf %3, %133 : vector<2x8x32xf32>
    %c0_84 = arith.constant 0 : index
    %c0_85 = arith.constant 0 : index
    %c0_86 = arith.constant 0 : index
    %135 = vector.load %arg7[%c0_84, %c0_85, %c0_86] : memref<1x1x32xf32, #tpu.memory_space<vmem>>, vector<1x1x32xf32>
    %136 = vector.shape_cast %135 : vector<1x1x32xf32> to vector<32xf32>
    %137 = vector.shape_cast %136 : vector<32xf32> to vector<1x1x32xf32>
    %138 = vector.broadcast %137 : vector<1x1x32xf32> to vector<2x8x32xf32>
    %139 = arith.addf %134, %138 : vector<2x8x32xf32>
    %c0_87 = arith.constant 0 : index
    %c0_88 = arith.constant 0 : index
    %c0_89 = arith.constant 0 : index
    %140 = vector.load %arg8[%c0_87, %c0_88, %c0_89] : memref<1x1x32xf32, #tpu.memory_space<vmem>>, vector<1x1x32xf32>
    %141 = vector.shape_cast %140 : vector<1x1x32xf32> to vector<32xf32>
    %c0_90 = arith.constant 0 : index
    %c0_91 = arith.constant 0 : index
    %c0_92 = arith.constant 0 : index
    %142 = vector.load %arg9[%c0_90, %c0_91, %c0_92] : memref<1x1x32xf32, #tpu.memory_space<vmem>>, vector<1x1x32xf32>
    %143 = vector.shape_cast %142 : vector<1x1x32xf32> to vector<32xf32>
    %cst_93 = arith.constant dense<0.000000e+00> : vector<2x8xf32>
    %144 = vector.multi_reduction <add>, %139, %cst_93 [2] : vector<2x8x32xf32> to vector<2x8xf32>
    %145 = vector.shape_cast %144 : vector<2x8xf32> to vector<2x8x1xf32>
    %cst_94 = arith.constant 3.200000e+01 : f32
    %146 = vector.broadcast %cst_94 : f32 to vector<2x8x1xf32>
    %147 = arith.divf %145, %146 : vector<2x8x1xf32>
    %148 = vector.broadcast %147 : vector<2x8x1xf32> to vector<2x8x32xf32>
    %149 = arith.subf %139, %148 : vector<2x8x32xf32>
    %150 = arith.mulf %149, %149 : vector<2x8x32xf32>
    %cst_95 = arith.constant dense<0.000000e+00> : vector<2x8xf32>
    %151 = vector.multi_reduction <add>, %150, %cst_95 [2] : vector<2x8x32xf32> to vector<2x8xf32>
    %152 = vector.shape_cast %151 : vector<2x8xf32> to vector<2x8x1xf32>
    %cst_96 = arith.constant 3.200000e+01 : f32
    %153 = vector.broadcast %cst_96 : f32 to vector<2x8x1xf32>
    %154 = arith.divf %152, %153 : vector<2x8x1xf32>
    %155 = vector.broadcast %147 : vector<2x8x1xf32> to vector<2x8x32xf32>
    %156 = arith.subf %139, %155 : vector<2x8x32xf32>
    %cst_97 = arith.constant 9.99999974E-6 : f32
    %157 = vector.broadcast %cst_97 : f32 to vector<2x8x1xf32>
    %158 = arith.addf %154, %157 : vector<2x8x1xf32>
    %159 = math.rsqrt %158 : vector<2x8x1xf32>
    %160 = vector.broadcast %159 : vector<2x8x1xf32> to vector<2x8x32xf32>
    %161 = arith.mulf %156, %160 : vector<2x8x32xf32>
    %162 = vector.shape_cast %141 : vector<32xf32> to vector<1x1x32xf32>
    %163 = vector.broadcast %162 : vector<1x1x32xf32> to vector<2x8x32xf32>
    %164 = arith.mulf %161, %163 : vector<2x8x32xf32>
    %165 = vector.shape_cast %143 : vector<32xf32> to vector<1x1x32xf32>
    %166 = vector.broadcast %165 : vector<1x1x32xf32> to vector<2x8x32xf32>
    %167 = arith.addf %164, %166 : vector<2x8x32xf32>
    %168 = vector.shape_cast %167 : vector<2x8x32xf32> to vector<16x32xf32>
    %169 = arith.truncf %168 : vector<16x32xf32> to vector<16x32xbf16>
    %c0_98 = arith.constant 0 : index
    %c0_99 = arith.constant 0 : index
    %c0_100 = arith.constant 0 : index
    %170 = vector.load %arg10[%c0_98, %c0_99, %c0_100] : memref<1x32x64xbf16, #tpu.memory_space<vmem>>, vector<1x32x64xbf16>
    %171 = vector.shape_cast %170 : vector<1x32x64xbf16> to vector<32x64xbf16>
    %cst_101 = arith.constant dense<0.000000e+00> : vector<16x64xf32>
    %172 = tpu.matmul %169, %171, %cst_101 {dimension_numbers = #tpu.dot_dimension_numbers<[1], [0], [0], [1], [0, 0, 1, 1], [], []>} : vector<16x32xbf16>, vector<32x64xbf16>, vector<16x64xf32> -> vector<16x64xf32>
    %c0_102 = arith.constant 0 : index
    %c0_103 = arith.constant 0 : index
    %c0_104 = arith.constant 0 : index
    %173 = vector.load %arg11[%c0_102, %c0_103, %c0_104] : memref<1x1x64xf32, #tpu.memory_space<vmem>>, vector<1x1x64xf32>
    %174 = vector.shape_cast %173 : vector<1x1x64xf32> to vector<64xf32>
    %175 = vector.shape_cast %174 : vector<64xf32> to vector<1x64xf32>
    %176 = vector.broadcast %175 : vector<1x64xf32> to vector<16x64xf32>
    %177 = arith.addf %172, %176 : vector<16x64xf32>
    %cst_105 = arith.constant 5.000000e-01 : f32
    %178 = vector.broadcast %cst_105 : f32 to vector<16x64xf32>
    %179 = arith.mulf %178, %177 : vector<16x64xf32>
    %cst_106 = arith.constant 0.707106769 : f32
    %180 = vector.broadcast %cst_106 : f32 to vector<16x64xf32>
    %181 = arith.mulf %177, %180 : vector<16x64xf32>
    %182 = math.absf %181 : vector<16x64xf32>
    %cst_107 = arith.constant 0.327591091 : f32
    %183 = vector.broadcast %cst_107 : f32 to vector<16x64xf32>
    %184 = arith.mulf %183, %182 : vector<16x64xf32>
    %cst_108 = arith.constant 1.000000e+00 : f32
    %185 = vector.broadcast %cst_108 : f32 to vector<16x64xf32>
    %186 = arith.addf %185, %184 : vector<16x64xf32>
    %cst_109 = arith.constant 1.000000e+00 : f32
    %187 = vector.broadcast %cst_109 : f32 to vector<16x64xf32>
    %188 = arith.divf %187, %186 : vector<16x64xf32>
    %cst_110 = arith.constant 1.06140542 : f32
    %189 = vector.broadcast %cst_110 : f32 to vector<16x64xf32>
    %190 = arith.mulf %189, %188 : vector<16x64xf32>
    %cst_111 = arith.constant -1.45315206 : f32
    %191 = vector.broadcast %cst_111 : f32 to vector<16x64xf32>
    %192 = arith.addf %190, %191 : vector<16x64xf32>
    %193 = arith.mulf %192, %188 : vector<16x64xf32>
    %cst_112 = arith.constant 1.42141378 : f32
    %194 = vector.broadcast %cst_112 : f32 to vector<16x64xf32>
    %195 = arith.addf %193, %194 : vector<16x64xf32>
    %196 = arith.mulf %195, %188 : vector<16x64xf32>
    %cst_113 = arith.constant -0.284496725 : f32
    %197 = vector.broadcast %cst_113 : f32 to vector<16x64xf32>
    %198 = arith.addf %196, %197 : vector<16x64xf32>
    %199 = arith.mulf %198, %188 : vector<16x64xf32>
    %cst_114 = arith.constant 0.254829586 : f32
    %200 = vector.broadcast %cst_114 : f32 to vector<16x64xf32>
    %201 = arith.addf %199, %200 : vector<16x64xf32>
    %202 = arith.mulf %201, %188 : vector<16x64xf32>
    %cst_115 = arith.constant 0.000000e+00 : f32
    %203 = vector.broadcast %cst_115 : f32 to vector<16x64xf32>
    %204 = arith.subf %203, %182 : vector<16x64xf32>
    %205 = arith.mulf %204, %182 : vector<16x64xf32>
    %206 = math.exp %205 : vector<16x64xf32>
    %207 = arith.mulf %202, %206 : vector<16x64xf32>
    %cst_116 = arith.constant 1.000000e+00 : f32
    %208 = vector.broadcast %cst_116 : f32 to vector<16x64xf32>
    %209 = arith.subf %208, %207 : vector<16x64xf32>
    %cst_117 = arith.constant 0.000000e+00 : f32
    %210 = vector.broadcast %cst_117 : f32 to vector<16x64xf32>
    %211 = arith.cmpf olt, %181, %210 : vector<16x64xf32>
    %cst_118 = arith.constant 0.000000e+00 : f32
    %212 = vector.broadcast %cst_118 : f32 to vector<16x64xf32>
    %213 = arith.subf %212, %209 : vector<16x64xf32>
    %214 = arith.select %211, %213, %209 : vector<16x64xi1>, vector<16x64xf32>
    %cst_119 = arith.constant 1.000000e+00 : f32
    %215 = vector.broadcast %cst_119 : f32 to vector<16x64xf32>
    %216 = arith.addf %215, %214 : vector<16x64xf32>
    %217 = arith.mulf %179, %216 : vector<16x64xf32>
    %218 = arith.truncf %217 : vector<16x64xf32> to vector<16x64xbf16>
    %c0_120 = arith.constant 0 : index
    %c0_121 = arith.constant 0 : index
    %c0_122 = arith.constant 0 : index
    %219 = vector.load %arg12[%c0_120, %c0_121, %c0_122] : memref<1x64x32xbf16, #tpu.memory_space<vmem>>, vector<1x64x32xbf16>
    %220 = vector.shape_cast %219 : vector<1x64x32xbf16> to vector<64x32xbf16>
    %cst_123 = arith.constant dense<0.000000e+00> : vector<16x32xf32>
    %221 = tpu.matmul %218, %220, %cst_123 {dimension_numbers = #tpu.dot_dimension_numbers<[1], [0], [0], [1], [0, 0, 1, 1], [], []>} : vector<16x64xbf16>, vector<64x32xbf16>, vector<16x32xf32> -> vector<16x32xf32>
    %c0_124 = arith.constant 0 : index
    %c0_125 = arith.constant 0 : index
    %c0_126 = arith.constant 0 : index
    %222 = vector.load %arg13[%c0_124, %c0_125, %c0_126] : memref<1x1x32xf32, #tpu.memory_space<vmem>>, vector<1x1x32xf32>
    %223 = vector.shape_cast %222 : vector<1x1x32xf32> to vector<32xf32>
    %224 = vector.shape_cast %223 : vector<32xf32> to vector<1x32xf32>
    %225 = vector.broadcast %224 : vector<1x32xf32> to vector<16x32xf32>
    %226 = arith.addf %221, %225 : vector<16x32xf32>
    %227 = vector.shape_cast %226 : vector<16x32xf32> to vector<2x8x32xf32>
    %228 = arith.addf %139, %227 : vector<2x8x32xf32>
    %c0_127 = arith.constant 0 : index
    %c0_128 = arith.constant 0 : index
    %c0_129 = arith.constant 0 : index
    %229 = vector.load %arg15[%c0_127, %c0_128, %c0_129] : memref<2x8x32xf32, #tpu.memory_space<vmem>>, vector<2x8x32xf32>
    tpu.vector_store %arg15[%c0_127, %c0_128, %c0_129], %228 {strides = array<i32>} : memref<2x8x32xf32, #tpu.memory_space<vmem>>, vector<2x8x32xf32>,
    %c1_i32 = arith.constant 1 : i32
    %230 = arith.cmpi eq, %arg1, %c1_i32 : i32
    %231 = arith.extui %230 : i1 to i32
    %c0_i32_130 = arith.constant 0 : i32
    %232 = arith.cmpi ne, %231, %c0_i32_130 : i32
    scf.if %232 {
      %c0_131 = arith.constant 0 : index
      %c0_132 = arith.constant 0 : index
      %c0_133 = arith.constant 0 : index
      %233 = vector.load %arg14[%c0_131, %c0_132, %c0_133] : memref<2x8x32xf32, #tpu.memory_space<vmem>>, vector<2x8x32xf32>
      tpu.vector_store %arg14[%c0_131, %c0_132, %c0_133], %228 {strides = array<i32>} : memref<2x8x32xf32, #tpu.memory_space<vmem>>, vector<2x8x32xf32>,
    } else {
    }
    return
  }
  func.func @transform_0(%arg0: i32, %arg1: i32) -> (i32, i32, i32) {
    %c0_i32 = arith.constant 0 : i32
    %c0_i32_0 = arith.constant 0 : i32
    %c0_i32_1 = arith.constant 0 : i32
    return %arg0, %c0_i32, %c0_i32_0 : i32, i32, i32
  }
  func.func @transform_1(%arg0: i32, %arg1: i32) -> (i32, i32, i32) {
    %c0_i32 = arith.constant 0 : i32
    %c0_i32_0 = arith.constant 0 : i32
    %c0_i32_1 = arith.constant 0 : i32
    return %arg1, %c0_i32, %c0_i32_0 : i32, i32, i32
  }
  func.func @transform_2(%arg0: i32, %arg1: i32) -> (i32, i32, i32) {
    %c0_i32 = arith.constant 0 : i32
    %c0_i32_0 = arith.constant 0 : i32
    %c0_i32_1 = arith.constant 0 : i32
    return %arg1, %c0_i32, %c0_i32_0 : i32, i32, i32
  }
  func.func @transform_3(%arg0: i32, %arg1: i32) -> (i32, i32, i32) {
    %c0_i32 = arith.constant 0 : i32
    %c0_i32_0 = arith.constant 0 : i32
    %c0_i32_1 = arith.constant 0 : i32
    return %arg1, %c0_i32, %c0_i32_0 : i32, i32, i32
  }
  func.func @transform_4(%arg0: i32, %arg1: i32) -> (i32, i32, i32) {
    %c0_i32 = arith.constant 0 : i32
    %c0_i32_0 = arith.constant 0 : i32
    %c0_i32_1 = arith.constant 0 : i32
    return %arg1, %c0_i32, %c0_i32_0 : i32, i32, i32
  }
  func.func @transform_5(%arg0: i32, %arg1: i32) -> (i32, i32, i32) {
    %c0_i32 = arith.constant 0 : i32
    %c0_i32_0 = arith.constant 0 : i32
    %c0_i32_1 = arith.constant 0 : i32
    return %arg1, %c0_i32, %c0_i32_0 : i32, i32, i32
  }
  func.func @transform_6(%arg0: i32, %arg1: i32) -> (i32, i32, i32) {
    %c0_i32 = arith.constant 0 : i32
    %c0_i32_0 = arith.constant 0 : i32
    %c0_i32_1 = arith.constant 0 : i32
    return %arg1, %c0_i32, %c0_i32_0 : i32, i32, i32
  }
  func.func @transform_7(%arg0: i32, %arg1: i32) -> (i32, i32, i32) {
    %c0_i32 = arith.constant 0 : i32
    %c0_i32_0 = arith.constant 0 : i32
    %c0_i32_1 = arith.constant 0 : i32
    return %arg1, %c0_i32, %c0_i32_0 : i32, i32, i32
  }
  func.func @transform_8(%arg0: i32, %arg1: i32) -> (i32, i32, i32) {
    %c0_i32 = arith.constant 0 : i32
    %c0_i32_0 = arith.constant 0 : i32
    %c0_i32_1 = arith.constant 0 : i32
    return %arg1, %c0_i32, %c0_i32_0 : i32, i32, i32
  }
  func.func @transform_9(%arg0: i32, %arg1: i32) -> (i32, i32, i32) {
    %c0_i32 = arith.constant 0 : i32
    %c0_i32_0 = arith.constant 0 : i32
    %c0_i32_1 = arith.constant 0 : i32
    return %arg1, %c0_i32, %c0_i32_0 : i32, i32, i32
  }
  func.func @transform_10(%arg0: i32, %arg1: i32) -> (i32, i32, i32) {
    %c0_i32 = arith.constant 0 : i32
    %c0_i32_0 = arith.constant 0 : i32
    %c0_i32_1 = arith.constant 0 : i32
    return %arg1, %c0_i32, %c0_i32_0 : i32, i32, i32
  }
  func.func @transform_11(%arg0: i32, %arg1: i32) -> (i32, i32, i32) {
    %c0_i32 = arith.constant 0 : i32
    %c0_i32_0 = arith.constant 0 : i32
    %c0_i32_1 = arith.constant 0 : i32
    return %arg1, %c0_i32, %c0_i32_0 : i32, i32, i32
  }
  func.func @transform_12(%arg0: i32, %arg1: i32) -> (i32, i32, i32) {
    %c0_i32 = arith.constant 0 : i32
    %c0_i32_0 = arith.constant 0 : i32
    %c0_i32_1 = arith.constant 0 : i32
    return %arg0, %c0_i32, %c0_i32_0 : i32, i32, i32
  }
}

</mosaic_0001>

<llo_original>
// kernel: tpu_custom_call.1
$region0: #{tpu_custom_call.1}
  #allocation0 [shape = 'u32[]', space=smem, size = 0x4, offset = 0x4, fixed_abs, tag = 'smem constant byte address 0x4 - core index']
  #allocation1 [shape = 'u32[144,128]{1,0:T(1,128)}', space=vmem, size = 0x12000, scoped, tag = 'internal scratch']
  #allocation2 [shape = 'f32[2,8,32]{2,1,0:T(8,128)}', space=vmem, size = 0x2000, scoped, tag = 'scratch operand']
  #allocation3 [shape = 'f32[2,8,192]{2,1,0:T(8,128)}', space=vmem, size = 0x4000, scoped, tag = 'scratch operand']
  #allocation4 [shape = 'f32[2,8,64]{2,1,0:T(8,128)}', space=vmem, size = 0x2000, scoped, tag = 'scratch operand']
  %s0 = inlined_call_operand.vmem [shape: f32[2,8,32], index: 0, kind: input, shape index: {}]
  %s1 = inlined_call_operand.vmem [shape: f32[2,1,32], index: 1, kind: input, shape index: {}]
  %s2 = inlined_call_operand.vmem [shape: f32[2,1,32], index: 2, kind: input, shape index: {}]
  %s3 = inlined_call_operand.vmem [shape: bf16[2,32,192], index: 3, kind: input, shape index: {}]
  %s4 = inlined_call_operand.vmem [shape: bf16[2,64,32], index: 4, kind: input, shape index: {}]
  %s5 = inlined_call_operand.vmem [shape: f32[2,1,32], index: 5, kind: input, shape index: {}]
  %s6 = inlined_call_operand.vmem [shape: f32[2,1,32], index: 6, kind: input, shape index: {}]
  %s7 = inlined_call_operand.vmem [shape: f32[2,1,32], index: 7, kind: input, shape index: {}]
  %s8 = inlined_call_operand.vmem [shape: bf16[2,32,64], index: 8, kind: input, shape index: {}]
  %s9 = inlined_call_operand.vmem [shape: f32[2,1,64], index: 9, kind: input, shape index: {}]
  %s10 = inlined_call_operand.vmem [shape: bf16[2,64,32], index: 10, kind: input, shape index: {}]
  %s11 = inlined_call_operand.vmem [shape: f32[2,1,32], index: 11, kind: input, shape index: {}]
  %s12 = inlined_call_operand.hbm [shape: f32[2,8,32], index: 12, kind: output, shape index: {}]
  %s13 = sld [smem:[#allocation0]]
  $region89: #{tpu_custom_call.1} parent=0
    _
  %s15 = ssub.s32 1, %s13
  %s16 = scalar_select 0, %s15, %s13
  $region1: #{tpu_custom_call.1} parent=0
    #allocation5 [shape = 'u8[8192]{0}', space=vmem, size = 0x2000, scoped, tag = 'output window, operand 0, single buffered']
    #allocation6 [shape = 's32[2]{0}', space=sflag, size = 0x8, scoped, tag = 'scoped memory for tpu_custom_call.1']
    %17 = vsyncpa [#allocation6], 0
    loop: start=0, step=1, limit=4
    $region2: #{tpu_custom_call.1} parent=1 // loop_pre_header
      _
    $region3: #{tpu_custom_call.1} parent=1 // loop_header
      %s19 = sphi 0, %s23
      %p20 = scmp.ge.s32.totalorder %s19, 4
      %s26 = sphi 0, %s38
      %s27 = sphi 0, %s34
      %s28 = sphi 0, %s26
      %s29 = sphi 0, %s27
      %s30 = sphi 0, %s28
      %s31 = sphi 0, %s29
      %s41 = sphi 0, %s43
      %s44 = sphi 0, %s41
      %s45 = sphi 0, %s44
      %s61 = sphi 0, %s45
      %s67 = sphi 0, %s69
      %s70 = sphi 0, %s67
      %s71 = sphi 0, %s70
      %s87 = sphi 0, %s71
      %s93 = sphi 0, %s95
      %s96 = sphi 0, %s93
      %s97 = sphi 0, %s96
      %s113 = sphi 0, %s97
      %s119 = sphi 0, %s121
      %s122 = sphi 0, %s119
      %s123 = sphi 0, %s122
      %s139 = sphi 0, %s123
      %s145 = sphi 0, %s147
      %s148 = sphi 0, %s145
      %s149 = sphi 0, %s148
      %s165 = sphi 0, %s149
      %s171 = sphi 0, %s173
      %s174 = sphi 0, %s171
      %s175 = sphi 0, %s174
      %s191 = sphi 0, %s175
      %s197 = sphi 0, %s199
      %s200 = sphi 0, %s197
      %s201 = sphi 0, %s200
      %s217 = sphi 0, %s201
      %s223 = sphi 0, %s225
      %s226 = sphi 0, %s223
      %s227 = sphi 0, %s226
      %s243 = sphi 0, %s227
      %s249 = sphi 0, %s251
      %s252 = sphi 0, %s249
      %s253 = sphi 0, %s252
      %s269 = sphi 0, %s253
      %s275 = sphi 0, %s277
      %s278 = sphi 0, %s275
      %s279 = sphi 0, %s278
      %s295 = sphi 0, %s279
      %s301 = sphi 0, %s303
      %s304 = sphi 0, %s301
      %s305 = sphi 0, %s304
      %s321 = sphi 0, %s305
      %s327 = sphi 0, %s329
      %s330 = sphi 0, %s327
      %s331 = sphi 0, %s330
      %s347 = sphi 0, %s331
      %s353 = sphi 0, %s355
      %s356 = sphi 0, %s353
      %s357 = sphi 0, %s356
      %s373 = sphi 0, %s357
    $region4: #{tpu_custom_call.1} parent=1 // loop_header_branch
      %22 = sbr.rel (%p20) target = $region8
    $region5: #{tpu_custom_call.1} parent=1 // loop_body
      %s24 = ssub.s32 %s19, 1
      %s25 = ssub.s32 %s19, 2
      %s32 = sadd.s32 1, %s27
      %p33 = scmp.ge.s32.totalorder %s32, 2
      %s34 = scalar_select %p33, 0, %s32
      %s35 = sadd.s32 1, %s26
      %s36 = scalar_select %p33, %s35, %s26
      %p37 = scmp.ge.s32.totalorder %s36, 1
      %s38 = scalar_select %p37, 0, %s36
      %s39 = ssub.s32 %s26, %s38
      %p40 = scmp.eq.s32.totalorder %s39, 0
      %s42 = sadd.s32 %s41, 1
      %s43 = scalar_select %p40, %s41, %s42
      %p46 = pneg %p40
      %p47 = scmp.eq.s32.totalorder %s19, 1
      %p48 = por %p46, %p47
      %p49 = scmp.ne.s32.totalorder %s41, %s44
      %p50 = scmp.eq.s32.totalorder %s19, 0
      %p51 = por %p49, %p50
      %p52 = scmp.ne.s32.totalorder %s41, %s44
      %p53 = scmp.eq.s32.totalorder %s24, 1
      %p54 = por %p52, %p53
      %p55 = scmp.ne.s32.totalorder %s44, %s45
      %p56 = scmp.eq.s32.totalorder %s24, 0
      %p57 = por %p55, %p56
      %p58 = scmp.ne.s32.totalorder %s44, %s45
      %p59 = scmp.eq.s32.totalorder %s25, 1
      %p60 = por %p58, %p59
      %p62 = scmp.ne.s32.totalorder %s45, %s61
      %p63 = scmp.eq.s32.totalorder %s25, 0
      %p64 = por %p62, %p63
      %s65 = ssub.s32 %s27, %s34
      %p66 = scmp.eq.s32.totalorder %s65, 0
      %s68 = sadd.s32 %s67, 1
      %s69 = scalar_select %p66, %s67, %s68
      %p72 = pneg %p66
      %p73 = scmp.eq.s32.totalorder %s19, 1
      %p74 = por %p72, %p73
      %p75 = scmp.ne.s32.totalorder %s67, %s70
      %p76 = scmp.eq.s32.totalorder %s19, 0
      %p77 = por %p75, %p76
      %p78 = scmp.ne.s32.totalorder %s67, %s70
      %p79 = scmp.eq.s32.totalorder %s24, 1
      %p80 = por %p78, %p79
      %p81 = scmp.ne.s32.totalorder %s70, %s71
      %p82 = scmp.eq.s32.totalorder %s24, 0
      %p83 = por %p81, %p82
      %p84 = scmp.ne.s32.totalorder %s70, %s71
      %p85 = scmp.eq.s32.totalorder %s25, 1
      %p86 = por %p84, %p85
      %p88 = scmp.ne.s32.totalorder %s71, %s87
      %p89 = scmp.eq.s32.totalorder %s25, 0
      %p90 = por %p88, %p89
      %s91 = ssub.s32 %s27, %s34
      %p92 = scmp.eq.s32.totalorder %s91, 0
      %s94 = sadd.s32 %s93, 1
      %s95 = scalar_select %p92, %s93, %s94
      %p98 = pneg %p92
      %p99 = scmp.eq.s32.totalorder %s19, 1
      %p100 = por %p98, %p99
      %p101 = scmp.ne.s32.totalorder %s93, %s96
      %p102 = scmp.eq.s32.totalorder %s19, 0
      %p103 = por %p101, %p102
      %p104 = scmp.ne.s32.totalorder %s93, %s96
      %p105 = scmp.eq.s32.totalorder %s24, 1
      %p106 = por %p104, %p105
      %p107 = scmp.ne.s32.totalorder %s96, %s97
      %p108 = scmp.eq.s32.totalorder %s24, 0
      %p109 = por %p107, %p108
      %p110 = scmp.ne.s32.totalorder %s96, %s97
      %p111 = scmp.eq.s32.totalorder %s25, 1
      %p112 = por %p110, %p111
      %p114 = scmp.ne.s32.totalorder %s97, %s113
      %p115 = scmp.eq.s32.totalorder %s25, 0
      %p116 = por %p114, %p115
      %s117 = ssub.s32 %s27, %s34
      %p118 = scmp.eq.s32.totalorder %s117, 0
      %s120 = sadd.s32 %s119, 1
      %s121 = scalar_select %p118, %s119, %s120
      %p124 = pneg %p118
      %p125 = scmp.eq.s32.totalorder %s19, 1
      %p126 = por %p124, %p125
      %p127 = scmp.ne.s32.totalorder %s119, %s122
      %p128 = scmp.eq.s32.totalorder %s19, 0
      %p129 = por %p127, %p128
      %p130 = scmp.ne.s32.totalorder %s119, %s122
      %p131 = scmp.eq.s32.totalorder %s24, 1
      %p132 = por %p130, %p131
      %p133 = scmp.ne.s32.totalorder %s122, %s123
      %p134 = scmp.eq.s32.totalorder %s24, 0
      %p135 = por %p133, %p134
      %p136 = scmp.ne.s32.totalorder %s122, %s123
      %p137 = scmp.eq.s32.totalorder %s25, 1
      %p138 = por %p136, %p137
      %p140 = scmp.ne.s32.totalorder %s123, %s139
      %p141 = scmp.eq.s32.totalorder %s25, 0
      %p142 = por %p140, %p141
      %s143 = ssub.s32 %s27, %s34
      %p144 = scmp.eq.s32.totalorder %s143, 0
      %s146 = sadd.s32 %s145, 1
      %s147 = scalar_select %p144, %s145, %s146
      %p150 = pneg %p144
      %p151 = scmp.eq.s32.totalorder %s19, 1
      %p152 = por %p150, %p151
      %p153 = scmp.ne.s32.totalorder %s145, %s148
      %p154 = scmp.eq.s32.totalorder %s19, 0
      %p155 = por %p153, %p154
      %p156 = scmp.ne.s32.totalorder %s145, %s148
      %p157 = scmp.eq.s32.totalorder %s24, 1
      %p158 = por %p156, %p157
      %p159 = scmp.ne.s32.totalorder %s148, %s149
      %p160 = scmp.eq.s32.totalorder %s24, 0
      %p161 = por %p159, %p160
      %p162 = scmp.ne.s32.totalorder %s148, %s149
      %p163 = scmp.eq.s32.totalorder %s25, 1
      %p164 = por %p162, %p163
      %p166 = scmp.ne.s32.totalorder %s149, %s165
      %p167 = scmp.eq.s32.totalorder %s25, 0
      %p168 = por %p166, %p167
      %s169 = ssub.s32 %s27, %s34
      %p170 = scmp.eq.s32.totalorder %s169, 0
      %s172 = sadd.s32 %s171, 1
      %s173 = scalar_select %p170, %s171, %s172
      %p176 = pneg %p170
      %p177 = scmp.eq.s32.totalorder %s19, 1
      %p178 = por %p176, %p177
      %p179 = scmp.ne.s32.totalorder %s171, %s174
      %p180 = scmp.eq.s32.totalorder %s19, 0
      %p181 = por %p179, %p180
      %p182 = scmp.ne.s32.totalorder %s171, %s174
      %p183 = scmp.eq.s32.totalorder %s24, 1
      %p184 = por %p182, %p183
      %p185 = scmp.ne.s32.totalorder %s174, %s175
      %p186 = scmp.eq.s32.totalorder %s24, 0
      %p187 = por %p185, %p186
      %p188 = scmp.ne.s32.totalorder %s174, %s175
      %p189 = scmp.eq.s32.totalorder %s25, 1
      %p190 = por %p188, %p189
      %p192 = scmp.ne.s32.totalorder %s175, %s191
      %p193 = scmp.eq.s32.totalorder %s25, 0
      %p194 = por %p192, %p193
      %s195 = ssub.s32 %s27, %s34
      %p196 = scmp.eq.s32.totalorder %s195, 0
      %s198 = sadd.s32 %s197, 1
      %s199 = scalar_select %p196, %s197, %s198
      %p202 = pneg %p196
      %p203 = scmp.eq.s32.totalorder %s19, 1
      %p204 = por %p202, %p203
      %p205 = scmp.ne.s32.totalorder %s197, %s200
      %p206 = scmp.eq.s32.totalorder %s19, 0
      %p207 = por %p205, %p206
      %p208 = scmp.ne.s32.totalorder %s197, %s200
      %p209 = scmp.eq.s32.totalorder %s24, 1
      %p210 = por %p208, %p209
      %p211 = scmp.ne.s32.totalorder %s200, %s201
      %p212 = scmp.eq.s32.totalorder %s24, 0
      %p213 = por %p211, %p212
      %p214 = scmp.ne.s32.totalorder %s200, %s201
      %p215 = scmp.eq.s32.totalorder %s25, 1
      %p216 = por %p214, %p215
      %p218 = scmp.ne.s32.totalorder %s201, %s217
      %p219 = scmp.eq.s32.totalorder %s25, 0
      %p220 = por %p218, %p219
      %s221 = ssub.s32 %s27, %s34
      %p222 = scmp.eq.s32.totalorder %s221, 0
      %s224 = sadd.s32 %s223, 1
      %s225 = scalar_select %p222, %s223, %s224
      %p228 = pneg %p222
      %p229 = scmp.eq.s32.totalorder %s19, 1
      %p230 = por %p228, %p229
      %p231 = scmp.ne.s32.totalorder %s223, %s226
      %p232 = scmp.eq.s32.totalorder %s19, 0
      %p233 = por %p231, %p232
      %p234 = scmp.ne.s32.totalorder %s223, %s226
      %p235 = scmp.eq.s32.totalorder %s24, 1
      %p236 = por %p234, %p235
      %p237 = scmp.ne.s32.totalorder %s226, %s227
      %p238 = scmp.eq.s32.totalorder %s24, 0
      %p239 = por %p237, %p238
      %p240 = scmp.ne.s32.totalorder %s226, %s227
      %p241 = scmp.eq.s32.totalorder %s25, 1
      %p242 = por %p240, %p241
      %p244 = scmp.ne.s32.totalorder %s227, %s243
      %p245 = scmp.eq.s32.totalorder %s25, 0
      %p246 = por %p244, %p245
      %s247 = ssub.s32 %s27, %s34
      %p248 = scmp.eq.s32.totalorder %s247, 0
      %s250 = sadd.s32 %s249, 1
      %s251 = scalar_select %p248, %s249, %s250
      %p254 = pneg %p248
      %p255 = scmp.eq.s32.totalorder %s19, 1
      %p256 = por %p254, %p255
      %p257 = scmp.ne.s32.totalorder %s249, %s252
      %p258 = scmp.eq.s32.totalorder %s19, 0
      %p259 = por %p257, %p258
      %p260 = scmp.ne.s32.totalorder %s249, %s252
      %p261 = scmp.eq.s32.totalorder %s24, 1
      %p262 = por %p260, %p261
      %p263 = scmp.ne.s32.totalorder %s252, %s253
      %p264 = scmp.eq.s32.totalorder %s24, 0
      %p265 = por %p263, %p264
      %p266 = scmp.ne.s32.totalorder %s252, %s253
      %p267 = scmp.eq.s32.totalorder %s25, 1
      %p268 = por %p266, %p267
      %p270 = scmp.ne.s32.totalorder %s253, %s269
      %p271 = scmp.eq.s32.totalorder %s25, 0
      %p272 = por %p270, %p271
      %s273 = ssub.s32 %s27, %s34
      %p274 = scmp.eq.s32.totalorder %s273, 0
      %s276 = sadd.s32 %s275, 1
      %s277 = scalar_select %p274, %s275, %s276
      %p280 = pneg %p274
      %p281 = scmp.eq.s32.totalorder %s19, 1
      %p282 = por %p280, %p281
      %p283 = scmp.ne.s32.totalorder %s275, %s278
      %p284 = scmp.eq.s32.totalorder %s19, 0
      %p285 = por %p283, %p284
      %p286 = scmp.ne.s32.totalorder %s275, %s278
      %p287 = scmp.eq.s32.totalorder %s24, 1
      %p288 = por %p286, %p287
      %p289 = scmp.ne.s32.totalorder %s278, %s279
      %p290 = scmp.eq.s32.totalorder %s24, 0
      %p291 = por %p289, %p290
      %p292 = scmp.ne.s32.totalorder %s278, %s279
      %p293 = scmp.eq.s32.totalorder %s25, 1
      %p294 = por %p292, %p293
      %p296 = scmp.ne.s32.totalorder %s279, %s295
      %p297 = scmp.eq.s32.totalorder %s25, 0
      %p298 = por %p296, %p297
      %s299 = ssub.s32 %s27, %s34
      %p300 = scmp.eq.s32.totalorder %s299, 0
      %s302 = sadd.s32 %s301, 1
      %s303 = scalar_select %p300, %s301, %s302
      %p306 = pneg %p300
      %p307 = scmp.eq.s32.totalorder %s19, 1
      %p308 = por %p306, %p307
      %p309 = scmp.ne.s32.totalorder %s301, %s304
      %p310 = scmp.eq.s32.totalorder %s19, 0
      %p311 = por %p309, %p310
      %p312 = scmp.ne.s32.totalorder %s301, %s304
      %p313 = scmp.eq.s32.totalorder %s24, 1
      %p314 = por %p312, %p313
      %p315 = scmp.ne.s32.totalorder %s304, %s305
      %p316 = scmp.eq.s32.totalorder %s24, 0
      %p317 = por %p315, %p316
      %p318 = scmp.ne.s32.totalorder %s304, %s305
      %p319 = scmp.eq.s32.totalorder %s25, 1
      %p320 = por %p318, %p319
      %p322 = scmp.ne.s32.totalorder %s305, %s321
      %p323 = scmp.eq.s32.totalorder %s25, 0
      %p324 = por %p322, %p323
      %s325 = ssub.s32 %s27, %s34
      %p326 = scmp.eq.s32.totalorder %s325, 0
      %s328 = sadd.s32 %s327, 1
      %s329 = scalar_select %p326, %s327, %s328
      %p332 = pneg %p326
      %p333 = scmp.eq.s32.totalorder %s19, 1
      %p334 = por %p332, %p333
      %p335 = scmp.ne.s32.totalorder %s327, %s330
      %p336 = scmp.eq.s32.totalorder %s19, 0
      %p337 = por %p335, %p336
      %p338 = scmp.ne.s32.totalorder %s327, %s330
      %p339 = scmp.eq.s32.totalorder %s24, 1
      %p340 = por %p338, %p339
      %p341 = scmp.ne.s32.totalorder %s330, %s331
      %p342 = scmp.eq.s32.totalorder %s24, 0
      %p343 = por %p341, %p342
      %p344 = scmp.ne.s32.totalorder %s330, %s331
      %p345 = scmp.eq.s32.totalorder %s25, 1
      %p346 = por %p344, %p345
      %p348 = scmp.ne.s32.totalorder %s331, %s347
      %p349 = scmp.eq.s32.totalorder %s25, 0
      %p350 = por %p348, %p349
      %s351 = ssub.s32 %s26, %s38
      %p352 = scmp.eq.s32.totalorder %s351, 0
      %s354 = sadd.s32 %s353, 1
      %s355 = scalar_select %p352, %s353, %s354
      %p358 = pneg %p352
      %p359 = scmp.eq.s32.totalorder %s19, 1
      %p360 = por %p358, %p359
      %p361 = scmp.ne.s32.totalorder %s353, %s356
      %p362 = scmp.eq.s32.totalorder %s19, 0
      %p363 = por %p361, %p362
      %p364 = scmp.ne.s32.totalorder %s353, %s356
      %p365 = scmp.eq.s32.totalorder %s24, 1
      %p366 = por %p364, %p365
      %p367 = scmp.ne.s32.totalorder %s356, %s357
      %p368 = scmp.eq.s32.totalorder %s24, 0
      %p369 = por %p367, %p368
      %p370 = scmp.ne.s32.totalorder %s356, %s357
      %p371 = scmp.eq.s32.totalorder %s25, 1
      %p372 = por %p370, %p371
      %p374 = scmp.ne.s32.totalorder %s357, %s373
      %p375 = scmp.eq.s32.totalorder %s25, 0
      %p376 = por %p374, %p375
      %p377 = scmp.le.s32.totalorder 1, %s19
      %p378 = scmp.lt.s32.totalorder %s19, 3
      %p379 = pnand %p377, %p378
      %p380 = pneg %p379
      // Predicated region
      $region9: #{tpu_custom_call.1} parent=5 // pred_check
        _
      $region10: #{tpu_custom_call.1} parent=5 // pred_check_branch
        %382 = sbr.rel (%p379) target = $region12
      $region11: #{tpu_custom_call.1} parent=5 // pred_region
        %s383 = ssub.s32 %s19, 1
        // Predicated region
        $region13: #{tpu_custom_call.1} parent=11 // pred_check
          %p384 = pneg %p57
        $region14: #{tpu_custom_call.1} parent=11 // pred_check_branch
          %386 = sbr.rel (%p384) target = $region16
        $region15: #{tpu_custom_call.1} parent=11 // pred_region
          %s387 = smul.u32 2, %s28
          %p388 = scmp.lt.s32.totalorder %s387, 1
          %s389 = scalar_select %p388, %s387, 1
          %s390 = smul.addr %s389, 8
          %s391 = scalar_lea.vmem %s0, %s390
          %s392 = smul.u32 2, %s28
        $region16: #{tpu_custom_call.1} parent=11 // pred_fallthru
          _
      $region12: #{tpu_custom_call.1} parent=5 // pred_fallthru
        _
      %p393 = scmp.lt.s32.totalorder %s19, 2
      // Predicated region
      $region17: #{tpu_custom_call.1} parent=5 // pred_check
        %p394 = pneg %p393
      $region18: #{tpu_custom_call.1} parent=5 // pred_check_branch
        %396 = sbr.rel (%p394) target = $region20
      $region19: #{tpu_custom_call.1} parent=5 // pred_region
        // Predicated region
        $region21: #{tpu_custom_call.1} parent=19 // pred_check
          %p397 = pneg %p77
        $region22: #{tpu_custom_call.1} parent=19 // pred_check_branch
          %399 = sbr.rel (%p397) target = $region24
        $region23: #{tpu_custom_call.1} parent=19 // pred_region
          %p400 = scmp.lt.s32.totalorder %s27, 1
          %s401 = scalar_select %p400, %s27, 1
          %s402 = scalar_lea.vmem %s1, %s401
        $region24: #{tpu_custom_call.1} parent=19 // pred_fallthru
          _
        // Predicated region
        $region25: #{tpu_custom_call.1} parent=19 // pred_check
          %p403 = pneg %p103
        $region26: #{tpu_custom_call.1} parent=19 // pred_check_branch
          %405 = sbr.rel (%p403) target = $region28
        $region27: #{tpu_custom_call.1} parent=19 // pred_region
          %p406 = scmp.lt.s32.totalorder %s27, 1
          %s407 = scalar_select %p406, %s27, 1
          %s408 = scalar_lea.vmem %s2, %s407
        $region28: #{tpu_custom_call.1} parent=19 // pred_fallthru
          _
        // Predicated region
        $region29: #{tpu_custom_call.1} parent=19 // pred_check
          %p409 = pneg %p129
        $region30: #{tpu_custom_call.1} parent=19 // pred_check_branch
          %411 = sbr.rel (%p409) target = $region32
        $region31: #{tpu_custom_call.1} parent=19 // pred_region
          %p412 = scmp.lt.s32.totalorder %s27, 1
          %s413 = scalar_select %p412, %s27, 1
          %s414 = smul.addr %s413, 8
          %s415 = smul.addr %s414, 4
          %s416 = scalar_lea.vmem %s3, %s415
        $region32: #{tpu_custom_call.1} parent=19 // pred_fallthru
          _
        // Predicated region
        $region33: #{tpu_custom_call.1} parent=19 // pred_check
          %p417 = pneg %p155
        $region34: #{tpu_custom_call.1} parent=19 // pred_check_branch
          %419 = sbr.rel (%p417) target = $region36
        $region35: #{tpu_custom_call.1} parent=19 // pred_region
          %p420 = scmp.lt.s32.totalorder %s27, 1
          %s421 = scalar_select %p420, %s27, 1
          %s422 = smul.addr %s421, 8
          %s423 = smul.addr %s422, 4
          %s424 = scalar_lea.vmem %s4, %s423
        $region36: #{tpu_custom_call.1} parent=19 // pred_fallthru
          _
        // Predicated region
        $region37: #{tpu_custom_call.1} parent=19 // pred_check
          %p425 = pneg %p181
        $region38: #{tpu_custom_call.1} parent=19 // pred_check_branch
          %427 = sbr.rel (%p425) target = $region40
        $region39: #{tpu_custom_call.1} parent=19 // pred_region
          %p428 = scmp.lt.s32.totalorder %s27, 1
          %s429 = scalar_select %p428, %s27, 1
          %s430 = scalar_lea.vmem %s5, %s429
        $region40: #{tpu_custom_call.1} parent=19 // pred_fallthru
          _
        // Predicated region
        $region41: #{tpu_custom_call.1} parent=19 // pred_check
          %p431 = pneg %p207
        $region42: #{tpu_custom_call.1} parent=19 // pred_check_branch
          %433 = sbr.rel (%p431) target = $region44
        $region43: #{tpu_custom_call.1} parent=19 // pred_region
          %p434 = scmp.lt.s32.totalorder %s27, 1
          %s435 = scalar_select %p434, %s27, 1
          %s436 = scalar_lea.vmem %s6, %s435
        $region44: #{tpu_custom_call.1} parent=19 // pred_fallthru
          _
        // Predicated region
        $region45: #{tpu_custom_call.1} parent=19 // pred_check
          %p437 = pneg %p233
        $region46: #{tpu_custom_call.1} parent=19 // pred_check_branch
          %439 = sbr.rel (%p437) target = $region48
        $region47: #{tpu_custom_call.1} parent=19 // pred_region
          %p440 = scmp.lt.s32.totalorder %s27, 1
          %s441 = scalar_select %p440, %s27, 1
          %s442 = scalar_lea.vmem %s7, %s441
        $region48: #{tpu_custom_call.1} parent=19 // pred_fallthru
          _
        // Predicated region
        $region49: #{tpu_custom_call.1} parent=19 // pred_check
          %p443 = pneg %p259
        $region50: #{tpu_custom_call.1} parent=19 // pred_check_branch
          %445 = sbr.rel (%p443) target = $region52
        $region51: #{tpu_custom_call.1} parent=19 // pred_region
          %p446 = scmp.lt.s32.totalorder %s27, 1
          %s447 = scalar_select %p446, %s27, 1
          %s448 = smul.addr %s447, 4
          %s449 = smul.addr %s448, 4
          %s450 = scalar_lea.vmem %s8, %s449
        $region52: #{tpu_custom_call.1} parent=19 // pred_fallthru
          _
        // Predicated region
        $region53: #{tpu_custom_call.1} parent=19 // pred_check
          %p451 = pneg %p285
        $region54: #{tpu_custom_call.1} parent=19 // pred_check_branch
          %453 = sbr.rel (%p451) target = $region56
        $region55: #{tpu_custom_call.1} parent=19 // pred_region
          %p454 = scmp.lt.s32.totalorder %s27, 1
          %s455 = scalar_select %p454, %s27, 1
          %s456 = scalar_lea.vmem %s9, %s455
        $region56: #{tpu_custom_call.1} parent=19 // pred_fallthru
          _
        // Predicated region
        $region57: #{tpu_custom_call.1} parent=19 // pred_check
          %p457 = pneg %p311
        $region58: #{tpu_custom_call.1} parent=19 // pred_check_branch
          %459 = sbr.rel (%p457) target = $region60
        $region59: #{tpu_custom_call.1} parent=19 // pred_region
          %p460 = scmp.lt.s32.totalorder %s27, 1
          %s461 = scalar_select %p460, %s27, 1
          %s462 = smul.addr %s461, 8
          %s463 = smul.addr %s462, 4
          %s464 = scalar_lea.vmem %s10, %s463
        $region60: #{tpu_custom_call.1} parent=19 // pred_fallthru
          _
        // Predicated region
        $region61: #{tpu_custom_call.1} parent=19 // pred_check
          %p465 = pneg %p337
        $region62: #{tpu_custom_call.1} parent=19 // pred_check_branch
          %467 = sbr.rel (%p465) target = $region64
        $region63: #{tpu_custom_call.1} parent=19 // pred_region
          %p468 = scmp.lt.s32.totalorder %s27, 1
          %s469 = scalar_select %p468, %s27, 1
          %s470 = scalar_lea.vmem %s11, %s469
        $region64: #{tpu_custom_call.1} parent=19 // pred_fallthru
          _
      $region20: #{tpu_custom_call.1} parent=5 // pred_fallthru
        _
      %p471 = scmp.le.s32.totalorder 1, %s19
      %p472 = scmp.lt.s32.totalorder %s19, 3
      %p473 = pnand %p471, %p472
      %p474 = pneg %p473
      // Predicated region
      $region65: #{tpu_custom_call.1} parent=5 // pred_check
        _
      $region66: #{tpu_custom_call.1} parent=5 // pred_check_branch
        %476 = sbr.rel (%p473) target = $region68
      $region67: #{tpu_custom_call.1} parent=5 // pred_region
        %s477 = ssub.s32 %s19, 1
        %s478 = smul.u32 2, %s28
        %p479 = scmp.lt.s32.totalorder %s478, 1
        %s480 = scalar_select %p479, %s478, 1
        %s481 = smul.addr %s480, 8
        %s482 = scalar_lea.vmem %s0, %s481
        %p483 = pneg %p57
        %p484 = pneg %p54
        %p485 = scmp.lt.s32.totalorder %s29, 1
        %s486 = scalar_select %p485, %s29, 1
        %s487 = scalar_lea.vmem %s1, %s486
        %p488 = pneg %p83
        %p489 = pneg %p80
        %p490 = scmp.lt.s32.totalorder %s29, 1
        %s491 = scalar_select %p490, %s29, 1
        %s492 = scalar_lea.vmem %s2, %s491
        %p493 = pneg %p109
        %p494 = pneg %p106
        %p495 = scmp.lt.s32.totalorder %s29, 1
        %s496 = scalar_select %p495, %s29, 1
        %s497 = smul.addr %s496, 8
        %s498 = smul.addr %s497, 4
        %s499 = scalar_lea.vmem %s3, %s498
        %p500 = pneg %p135
        %p501 = pneg %p132
        %p502 = scmp.lt.s32.totalorder %s29, 1
        %s503 = scalar_select %p502, %s29, 1
        %s504 = smul.addr %s503, 8
        %s505 = smul.addr %s504, 4
        %s506 = scalar_lea.vmem %s4, %s505
        %p507 = pneg %p161
        %p508 = pneg %p158
        %p509 = scmp.lt.s32.totalorder %s29, 1
        %s510 = scalar_select %p509, %s29, 1
        %s511 = scalar_lea.vmem %s5, %s510
        %p512 = pneg %p187
        %p513 = pneg %p184
        %p514 = scmp.lt.s32.totalorder %s29, 1
        %s515 = scalar_select %p514, %s29, 1
        %s516 = scalar_lea.vmem %s6, %s515
        %p517 = pneg %p213
        %p518 = pneg %p210
        %p519 = scmp.lt.s32.totalorder %s29, 1
        %s520 = scalar_select %p519, %s29, 1
        %s521 = scalar_lea.vmem %s7, %s520
        %p522 = pneg %p239
        %p523 = pneg %p236
        %p524 = scmp.lt.s32.totalorder %s29, 1
        %s525 = scalar_select %p524, %s29, 1
        %s526 = smul.addr %s525, 4
        %s527 = smul.addr %s526, 4
        %s528 = scalar_lea.vmem %s8, %s527
        %p529 = pneg %p265
        %p530 = pneg %p262
        %p531 = scmp.lt.s32.totalorder %s29, 1
        %s532 = scalar_select %p531, %s29, 1
        %s533 = scalar_lea.vmem %s9, %s532
        %p534 = pneg %p291
        %p535 = pneg %p288
        %p536 = scmp.lt.s32.totalorder %s29, 1
        %s537 = scalar_select %p536, %s29, 1
        %s538 = smul.addr %s537, 8
        %s539 = smul.addr %s538, 4
        %s540 = scalar_lea.vmem %s10, %s539
        %p541 = pneg %p317
        %p542 = pneg %p314
        %p543 = scmp.lt.s32.totalorder %s29, 1
        %s544 = scalar_select %p543, %s29, 1
        %s545 = scalar_lea.vmem %s11, %s544
        %p546 = pneg %p343
        %p547 = pneg %p340
        %p548 = pneg %p369
        %p549 = pneg %p366
        %s550 = smul.u32 2, %s28
        %p551 = scmp.lt.s32.totalorder %s550, 1
        %s552 = scalar_select %p551, %s550, 1
        %s553 = smul.addr %s552, 8
        %s554 = scalar_lea.vmem %s0, %s553
        %s555 = smul.u32 2, %s28
        %p556 = scmp.lt.s32.totalorder %s29, 1
        %s557 = scalar_select %p556, %s29, 1
        %s558 = scalar_lea.vmem %s1, %s557
        %p559 = scmp.lt.s32.totalorder %s29, 1
        %s560 = scalar_select %p559, %s29, 1
        %s561 = scalar_lea.vmem %s2, %s560
        %p562 = scmp.lt.s32.totalorder %s29, 1
        %s563 = scalar_select %p562, %s29, 1
        %s564 = smul.addr %s563, 8
        %s565 = smul.addr %s564, 4
        %s566 = scalar_lea.vmem %s3, %s565
        %p567 = scmp.lt.s32.totalorder %s29, 1
        %s568 = scalar_select %p567, %s29, 1
        %s569 = smul.addr %s568, 8
        %s570 = smul.addr %s569, 4
        %s571 = scalar_lea.vmem %s4, %s570
        %p572 = scmp.lt.s32.totalorder %s29, 1
        %s573 = scalar_select %p572, %s29, 1
        %s574 = scalar_lea.vmem %s5, %s573
        %p575 = scmp.lt.s32.totalorder %s29, 1
        %s576 = scalar_select %p575, %s29, 1
        %s577 = scalar_lea.vmem %s6, %s576
        %p578 = scmp.lt.s32.totalorder %s29, 1
        %s579 = scalar_select %p578, %s29, 1
        %s580 = scalar_lea.vmem %s7, %s579
        %p581 = scmp.lt.s32.totalorder %s29, 1
        %s582 = scalar_select %p581, %s29, 1
        %s583 = smul.addr %s582, 4
        %s584 = smul.addr %s583, 4
        %s585 = scalar_lea.vmem %s8, %s584
        %p586 = scmp.lt.s32.totalorder %s29, 1
        %s587 = scalar_select %p586, %s29, 1
        %s588 = scalar_lea.vmem %s9, %s587
        %p589 = scmp.lt.s32.totalorder %s29, 1
        %s590 = scalar_select %p589, %s29, 1
        %s591 = smul.addr %s590, 8
        %s592 = smul.addr %s591, 4
        %s593 = scalar_lea.vmem %s10, %s592
        %p594 = scmp.lt.s32.totalorder %s29, 1
        %s595 = scalar_select %p594, %s29, 1
        %s596 = scalar_lea.vmem %s11, %s595
        %s597 = smul.u32 2, %s28
        %p599 = scmp.eq.s32.totalorder %s29, 0
        // Predicated region
        $region69: #{tpu_custom_call.1} parent=67 // pred_check
          %p600 = pneg %p599
        $region70: #{tpu_custom_call.1} parent=67 // pred_check_branch
          %602 = sbr.rel (%p600) target = $region72
        $region71: #{tpu_custom_call.1} parent=67 // pred_region
          %v603 = vld [vmem:[%s554] sm:$0xff]
          %v604 = vld [vmem:[%s554 + $0x8] sm:$0xff]
          %vm605 = vcmask 261120
          %606 = vst.msk [vmem:[#allocation2] sm:$0xff] %vm605, %v603
          %607 = vst.msk [vmem:[#allocation2 + $0x8] sm:$0xff] %vm605, %v604
        $region72: #{tpu_custom_call.1} parent=67 // pred_fallthru
          _
        %v608 = vld [vmem:[#allocation2] sm:$0xff]
        %v609 = vld [vmem:[#allocation2 + $0x8] sm:$0xff]
        %v610 = vld [vmem:[%s558] sm:$0x1]
        %v611 = vld [vmem:[%s561] sm:$0x1]
        %vm612 = vcmask 261120
        %v613 = vsel %vm612, %v608, 0.0
        %614 = vadd.xlane.f32.xlu0 %v613
        %v615 = vpop.xlane.xlu0 %614
        %v616 = vsel %vm612, %v609, 0.0
        %617 = vadd.xlane.f32.xlu0 %v616
        %v618 = vpop.xlane.xlu0 %617
        %v619 = vrcp.pop 32.0
        %v620 = vmul.f32 %v615, %v619
        %v621 = vmul.f32 %v618, %v619
        %v622 = vsub.f32 %v608, %v620
        %v623 = vsub.f32 %v609, %v621
        %v624 = vmul.f32 %v622, %v622
        %v625 = vmul.f32 %v623, %v623
        %v626 = vsel %vm612, %v624, 0.0
        %627 = vadd.xlane.f32.xlu0 %v626
        %v628 = vpop.xlane.xlu0 %627
        %v629 = vsel %vm612, %v625, 0.0
        %630 = vadd.xlane.f32.xlu0 %v629
        %v631 = vpop.xlane.xlu0 %630
        %v632 = vmul.f32 %v628, %v619
        %v633 = vmul.f32 %v631, %v619
        %v634 = vadd.f32 %v632, 1e-05
        %v635 = vadd.f32 %v633, 1e-05
        %v636 = vrsqrt.pop %v634
        %v637 = vrsqrt.pop %v635
        %v638 = vmul.f32 %v622, %v636
        %v639 = vmul.f32 %v623, %v637
        %v641 = vlaneseq
        %v642 = vshrl.u32 %v641, 7
        %v643 = vsub.s32 0, %v642
        %v644 = vrot.slane %v610, %v643
        %v646 = vmul.f32 %v638, %v644
        %v647 = vmul.f32 %v639, %v644
        %v649 = vlaneseq
        %v650 = vshrl.u32 %v649, 7
        %v651 = vsub.s32 0, %v650
        %v652 = vrot.slane %v611, %v651
        %v654 = vadd.f32 %v646, %v652
        %v655 = vadd.f32 %v647, %v652
        %v656 = vpack.c.bf16 %v655, %v654
        %v657 = vld [vmem:[%s566] sm:$0xff]
        %v658 = vld [vmem:[%s566 + $0x8] sm:$0xff]
        %v659 = vld [vmem:[%s566 + $0x10] sm:$0xff]
        %v660 = vld [vmem:[%s566 + $0x18] sm:$0xff]
        %v665 = vunpack.c.l.b16 %v657
        %v666 = vunpack.c.h.b16 %v657
        %v667 = vunpack.c.l.b16 %v658
        %v668 = vunpack.c.h.b16 %v658
        %v669 = vunpack.c.l.b16 %v659
        %v670 = vunpack.c.h.b16 %v659
        %v671 = vunpack.c.l.b16 %v660
        %v672 = vunpack.c.h.b16 %v660
        %v673 = vpack.c.b16 %v667, %v665
        %v674 = vpack.c.b16 %v668, %v666
        %v675 = vpack.c.b16 %v671, %v669
        %v676 = vpack.c.b16 %v672, %v670
        %v682 = vsel %vm612, %v656, 0
        %684 = vmatprep.subr.bf16.mxu0 0
        %685 = vmatpush1.bf16.msra.mxu0 0
        %686 = vmatprep.subr.bf16.mxu0 0
        %687 = vmatpush1.bf16.msra.mxu0 0
        %688 = vmatprep.subr.bf16.mxu0 0
        %689 = vmatpush1.bf16.msra.mxu0 0
        %690 = vmatprep.subr.bf16.mxu0 0
        %691 = vmatpush1.bf16.msra.mxu0 0
        %692 = vmatprep.subr.bf16.mxu0 0
        %693 = vmatpush1.bf16.msra.mxu0 0
        %694 = vmatprep.subr.bf16.mxu0 0
        %695 = vmatpush1.bf16.msra.mxu0 0
        %696 = vmatprep.subr.bf16.mxu0 %v676
        %697 = vmatpush1.bf16.msra.mxu0 %v675
        %698 = vmatprep.subr.bf16.mxu0 %v674
        %699 = vmatpush1.bf16.msra.mxu0 %v673
        %700 = vmatprep.subr.bf16.mxu0 0
        %701 = vmatpush2.bf16.msra.mxu0 0
        %702 = vmatprep.subr.bf16.mxu0 0
        %703 = vmatpush2.bf16.msra.mxu0 0
        %704 = vmatprep.subr.bf16.mxu0 0
        %705 = vmatpush2.bf16.msra.mxu0 0
        %706 = vmatprep.subr.bf16.mxu0 0
        %707 = vmatpush2.bf16.msra.mxu0 0
        %708 = vmatprep.subr.bf16.mxu0 0
        %709 = vmatpush2.bf16.msra.mxu0 0
        %710 = vmatprep.subr.bf16.mxu0 0
        %711 = vmatpush2.bf16.msra.mxu0 0
        %712 = vmatprep.subr.bf16.mxu0 0
        %713 = vmatpush2.bf16.msra.mxu0 0
        %714 = vmatprep.subr.bf16.mxu0 0
        %715 = vmatpush2.bf16.msra.mxu0 0
        %716 = vmatprep.mubr.bf16.mxu0 0
        %717 = vmatmul.mubr.bf16.gmra.mxu0 %v682
        %v718 = vpop.f32.mrf.mxu0
        %v719 = vadd.f32 0.0, %v718
        %v720 = vpop.f32.mrf.mxu0
        %v721 = vadd.f32 0.0, %v720
        %v722 = vpop.f32.mrf.mxu0
        %v723 = vadd.f32 0.0, %v722
        %v724 = vpop.f32.mrf.mxu0
        %v725 = vadd.f32 0.0, %v724
        %726 = vdwg.mxu0
        %727 = vst [vmem:[#allocation3] sm:$0xff] %v719
        %vm728 = vcmask 523264
        %729 = vst.msk [vmem:[#allocation3 + $0x8] sm:$0xff] %vm728, %v721
        %730 = vst [vmem:[#allocation3 + $0x10] sm:$0xff] %v723
        %731 = vst.msk [vmem:[#allocation3 + $0x18] sm:$0xff] %vm728, %v725
        %v732 = vld [vmem:[#allocation3] sm:$0xff]
        %v733 = vld [vmem:[#allocation3 + $0x10] sm:$0xff]
        %v734 = vmul.f32 %v732, 0.25
        %v735 = vmul.f32 %v733, 0.25
        %v736 = vld [vmem:[#allocation3 + $0x8] sm:$0xff]
        %v737 = vld [vmem:[#allocation3 + $0x18] sm:$0xff]
        %v738 = vpack.c.bf16 %v734, %v734
        %v739 = vpack.c.bf16 %v735, %v735
        %v740 = vpack.c.bf16 %v732, %v732
        %v741 = vpack.c.bf16 %v733, %v733
        %743 = vrot.lane.b32.xlu0 %v740, 64
        %v744 = vpop.permute.xlu0 %743
        %vm745 = vcmask 130048
        %v747 = vsel %vm745, %v738, 0
        %v750 = vsel %vm745, %v744, 0
        %752 = vmatprep.subr.bf16.mxu0 0
        %753 = vmatpush1.bf16.xpose.msra.mxu0 0
        %754 = vmatprep.subr.bf16.mxu0 0
        %755 = vmatpush1.bf16.xpose.msra.mxu0 0
        %756 = vmatprep.subr.bf16.mxu0 0
        %757 = vmatpush1.bf16.xpose.msra.mxu0 0
        %758 = vmatprep.subr.bf16.mxu0 0
        %759 = vmatpush1.bf16.xpose.msra.mxu0 0
        %760 = vmatprep.subr.bf16.mxu0 0
        %761 = vmatpush1.bf16.xpose.msra.mxu0 0
        %762 = vmatprep.subr.bf16.mxu0 0
        %763 = vmatpush1.bf16.xpose.msra.mxu0 0
        %764 = vmatprep.subr.bf16.mxu0 0
        %765 = vmatpush1.bf16.xpose.msra.mxu0 0
        %766 = vmatprep.subr.bf16.mxu0 0
        %767 = vmatpush1.bf16.xpose.msra.mxu0 %v750
        %768 = vmatprep.subr.bf16.mxu0 0
        %769 = vmatpush2.bf16.xpose.msra.mxu0 0
        %770 = vmatprep.subr.bf16.mxu0 0
        %771 = vmatpush2.bf16.xpose.msra.mxu0 0
        %772 = vmatprep.subr.bf16.mxu0 0
        %773 = vmatpush2.bf16.xpose.msra.mxu0 0
        %774 = vmatprep.subr.bf16.mxu0 0
        %775 = vmatpush2.bf16.xpose.msra.mxu0 0
        %776 = vmatprep.subr.bf16.mxu0 0
        %777 = vmatpush2.bf16.xpose.msra.mxu0 0
        %778 = vmatprep.subr.bf16.mxu0 0
        %779 = vmatpush2.bf16.xpose.msra.mxu0 0
        %780 = vmatprep.subr.bf16.mxu0 0
        %781 = vmatpush2.bf16.xpose.msra.mxu0 0
        %782 = vmatprep.subr.bf16.mxu0 0
        %783 = vmatpush2.bf16.xpose.msra.mxu0 0
        %784 = vmatprep.mubr.bf16.mxu0 0
        %785 = vmatmul.mubr.bf16.gmra.mxu0 %v747
        %v786 = vpop.f32.mrf.mxu0
        %v787 = vadd.f32 0.0, %v786
        %v788 = vpop.f32.mrf.mxu0
        %v789 = vpop.f32.mrf.mxu0
        %v790 = vpop.f32.mrf.mxu0
        %791 = vdwg.mxu0
        %793 = vrot.lane.b32.xlu0 %v741, 64
        %v794 = vpop.permute.xlu0 %793
        %v796 = vsel %vm745, %v739, 0
        %v799 = vsel %vm745, %v794, 0
        %801 = vmatprep.subr.bf16.mxu0 0
        %802 = vmatpush1.bf16.xpose.msra.mxu0 0
        %803 = vmatprep.subr.bf16.mxu0 0
        %804 = vmatpush1.bf16.xpose.msra.mxu0 0
        %805 = vmatprep.subr.bf16.mxu0 0
        %806 = vmatpush1.bf16.xpose.msra.mxu0 0
        %807 = vmatprep.subr.bf16.mxu0 0
        %808 = vmatpush1.bf16.xpose.msra.mxu0 0
        %809 = vmatprep.subr.bf16.mxu0 0
        %810 = vmatpush1.bf16.xpose.msra.mxu0 0
        %811 = vmatprep.subr.bf16.mxu0 0
        %812 = vmatpush1.bf16.xpose.msra.mxu0 0
        %813 = vmatprep.subr.bf16.mxu0 0
        %814 = vmatpush1.bf16.xpose.msra.mxu0 0
        %815 = vmatprep.subr.bf16.mxu0 0
        %816 = vmatpush1.bf16.xpose.msra.mxu0 %v799
        %817 = vmatprep.subr.bf16.mxu0 0
        %818 = vmatpush2.bf16.xpose.msra.mxu0 0
        %819 = vmatprep.subr.bf16.mxu0 0
        %820 = vmatpush2.bf16.xpose.msra.mxu0 0
        %821 = vmatprep.subr.bf16.mxu0 0
        %822 = vmatpush2.bf16.xpose.msra.mxu0 0
        %823 = vmatprep.subr.bf16.mxu0 0
        %824 = vmatpush2.bf16.xpose.msra.mxu0 0
        %825 = vmatprep.subr.bf16.mxu0 0
        %826 = vmatpush2.bf16.xpose.msra.mxu0 0
        %827 = vmatprep.subr.bf16.mxu0 0
        %828 = vmatpush2.bf16.xpose.msra.mxu0 0
        %829 = vmatprep.subr.bf16.mxu0 0
        %830 = vmatpush2.bf16.xpose.msra.mxu0 0
        %831 = vmatprep.subr.bf16.mxu0 0
        %832 = vmatpush2.bf16.xpose.msra.mxu0 0
        %833 = vmatprep.mubr.bf16.mxu0 0
        %834 = vmatmul.mubr.bf16.gmra.mxu0 %v796
        %v835 = vpop.f32.mrf.mxu0
        %v836 = vadd.f32 0.0, %v835
        %v837 = vpop.f32.mrf.mxu0
        %v838 = vpop.f32.mrf.mxu0
        %v839 = vpop.f32.mrf.mxu0
        %840 = vdwg.mxu0
        %vm841 = vcmask 64512
        %v842 = vsel %vm841, %v787, -inf
        %843 = vmax.xlane.f32.xlu0 %v842
        %v844 = vpop.xlane.xlu0 %843
        %v845 = vsel %vm841, %v836, -inf
        %846 = vmax.xlane.f32.xlu0 %v845
        %v847 = vpop.xlane.xlu0 %846
        %v848 = vsub.f32 %v787, %v844
        %v849 = vsub.f32 %v836, %v847
        %v850 = vmul.f32 %v848, 1.442695
        %v851 = vpow.pop %v850
        %v852 = vmul.f32 %v849, 1.442695
        %v853 = vpow.pop %v852
        %v854 = vsel %vm841, %v851, 0.0
        %855 = vadd.xlane.f32.xlu0 %v854
        %v856 = vpop.xlane.xlu0 %855
        %v857 = vsel %vm841, %v853, 0.0
        %858 = vadd.xlane.f32.xlu0 %v857
        %v859 = vpop.xlane.xlu0 %858
        %v860 = vrcp.pop %v856
        %v861 = vrcp.pop %v859
        %v862 = vmul.f32 %v851, %v860
        %v863 = vmul.f32 %v853, %v861
        %v864 = vpack.c.bf16 %v862, %v862
        %v865 = vpack.c.bf16 %v863, %v863
        %v866 = vpack.c.bf16 %v736, %v736
        %v867 = vpack.c.bf16 %v737, %v737
        %v869 = vsel %vm841, %v864, 0
        %vm871 = vcmask 1043456
        %v873 = vsel %vm871, %v866, 0
        %875 = vmatprep.subr.bf16.mxu0 0
        %876 = vmatpush1.bf16.msra.mxu0 0
        %877 = vmatprep.subr.bf16.mxu0 0
        %878 = vmatpush1.bf16.msra.mxu0 0
        %879 = vmatprep.subr.bf16.mxu0 0
        %880 = vmatpush1.bf16.msra.mxu0 0
        %881 = vmatprep.subr.bf16.mxu0 0
        %882 = vmatpush1.bf16.msra.mxu0 0
        %883 = vmatprep.subr.bf16.mxu0 0
        %884 = vmatpush1.bf16.msra.mxu0 0
        %885 = vmatprep.subr.bf16.mxu0 0
        %886 = vmatpush1.bf16.msra.mxu0 0
        %887 = vmatprep.subr.bf16.mxu0 0
        %888 = vmatpush1.bf16.msra.mxu0 0
        %889 = vmatprep.subr.bf16.mxu0 0
        %890 = vmatpush1.bf16.msra.mxu0 %v873
        %891 = vmatprep.subr.bf16.mxu0 0
        %892 = vmatpush2.bf16.msra.mxu0 0
        %893 = vmatprep.subr.bf16.mxu0 0
        %894 = vmatpush2.bf16.msra.mxu0 0
        %895 = vmatprep.subr.bf16.mxu0 0
        %896 = vmatpush2.bf16.msra.mxu0 0
        %897 = vmatprep.subr.bf16.mxu0 0
        %898 = vmatpush2.bf16.msra.mxu0 0
        %899 = vmatprep.subr.bf16.mxu0 0
        %900 = vmatpush2.bf16.msra.mxu0 0
        %901 = vmatprep.subr.bf16.mxu0 0
        %902 = vmatpush2.bf16.msra.mxu0 0
        %903 = vmatprep.subr.bf16.mxu0 0
        %904 = vmatpush2.bf16.msra.mxu0 0
        %905 = vmatprep.subr.bf16.mxu0 0
        %906 = vmatpush2.bf16.msra.mxu0 0
        %907 = vmatprep.mubr.bf16.mxu0 0
        %908 = vmatmul.mubr.bf16.gmra.mxu0 %v869
        %v909 = vpop.f32.mrf.mxu0
        %v910 = vadd.f32 0.0, %v909
        %v911 = vpop.f32.mrf.mxu0
        %v912 = vpop.f32.mrf.mxu0
        %v913 = vpop.f32.mrf.mxu0
        %914 = vdwg.mxu0
        %v916 = vsel %vm841, %v865, 0
        %v919 = vsel %vm871, %v867, 0
        %921 = vmatprep.subr.bf16.mxu0 0
        %922 = vmatpush1.bf16.msra.mxu0 0
        %923 = vmatprep.subr.bf16.mxu0 0
        %924 = vmatpush1.bf16.msra.mxu0 0
        %925 = vmatprep.subr.bf16.mxu0 0
        %926 = vmatpush1.bf16.msra.mxu0 0
        %927 = vmatprep.subr.bf16.mxu0 0
        %928 = vmatpush1.bf16.msra.mxu0 0
        %929 = vmatprep.subr.bf16.mxu0 0
        %930 = vmatpush1.bf16.msra.mxu0 0
        %931 = vmatprep.subr.bf16.mxu0 0
        %932 = vmatpush1.bf16.msra.mxu0 0
        %933 = vmatprep.subr.bf16.mxu0 0
        %934 = vmatpush1.bf16.msra.mxu0 0
        %935 = vmatprep.subr.bf16.mxu0 0
        %936 = vmatpush1.bf16.msra.mxu0 %v919
        %937 = vmatprep.subr.bf16.mxu0 0
        %938 = vmatpush2.bf16.msra.mxu0 0
        %939 = vmatprep.subr.bf16.mxu0 0
        %940 = vmatpush2.bf16.msra.mxu0 0
        %941 = vmatprep.subr.bf16.mxu0 0
        %942 = vmatpush2.bf16.msra.mxu0 0
        %943 = vmatprep.subr.bf16.mxu0 0
        %944 = vmatpush2.bf16.msra.mxu0 0
        %945 = vmatprep.subr.bf16.mxu0 0
        %946 = vmatpush2.bf16.msra.mxu0 0
        %947 = vmatprep.subr.bf16.mxu0 0
        %948 = vmatpush2.bf16.msra.mxu0 0
        %949 = vmatprep.subr.bf16.mxu0 0
        %950 = vmatpush2.bf16.msra.mxu0 0
        %951 = vmatprep.subr.bf16.mxu0 0
        %952 = vmatpush2.bf16.msra.mxu0 0
        %953 = vmatprep.mubr.bf16.mxu0 0
        %954 = vmatmul.mubr.bf16.gmra.mxu0 %v916
        %v955 = vpop.f32.mrf.mxu0
        %v956 = vadd.f32 0.0, %v955
        %v957 = vpop.f32.mrf.mxu0
        %v958 = vpop.f32.mrf.mxu0
        %v959 = vpop.f32.mrf.mxu0
        %960 = vdwg.mxu0
        %961 = vst.msk [vmem:[#allocation4] sm:$0xff] %vm745, %v910
        %962 = vst.msk [vmem:[#allocation4 + $0x8] sm:$0xff] %vm745, %v956
        %v963 = vld [vmem:[#allocation3] sm:$0xff]
        %v964 = vld [vmem:[#allocation3 + $0x10] sm:$0xff]
        %v965 = vmul.f32 %v963, 0.25
        %v966 = vmul.f32 %v964, 0.25
        %v967 = vld [vmem:[#allocation3 + $0x8] sm:$0xff]
        %v968 = vld [vmem:[#allocation3 + $0x18] sm:$0xff]
        %v969 = vpack.c.bf16 %v965, %v965
        %v970 = vpack.c.bf16 %v966, %v966
        %v971 = vpack.c.bf16 %v963, %v963
        %v972 = vpack.c.bf16 %v964, %v964
        %974 = vrot.lane.b32.xlu0 %v969, 112
        %v975 = vpop.permute.xlu0 %974
        %977 = vrot.lane.b32.xlu0 %v971, 48
        %v978 = vpop.permute.xlu0 %977
        %v980 = vsel %vm745, %v975, 0
        %v983 = vsel %vm745, %v978, 0
        %985 = vmatprep.subr.bf16.mxu0 0
        %986 = vmatpush1.bf16.xpose.msra.mxu0 0
        %987 = vmatprep.subr.bf16.mxu0 0
        %988 = vmatpush1.bf16.xpose.msra.mxu0 0
        %989 = vmatprep.subr.bf16.mxu0 0
        %990 = vmatpush1.bf16.xpose.msra.mxu0 0
        %991 = vmatprep.subr.bf16.mxu0 0
        %992 = vmatpush1.bf16.xpose.msra.mxu0 0
        %993 = vmatprep.subr.bf16.mxu0 0
        %994 = vmatpush1.bf16.xpose.msra.mxu0 0
        %995 = vmatprep.subr.bf16.mxu0 0
        %996 = vmatpush1.bf16.xpose.msra.mxu0 0
        %997 = vmatprep.subr.bf16.mxu0 0
        %998 = vmatpush1.bf16.xpose.msra.mxu0 0
        %999 = vmatprep.subr.bf16.mxu0 0
        %1000 = vmatpush1.bf16.xpose.msra.mxu0 %v983
        %1001 = vmatprep.subr.bf16.mxu0 0
        %1002 = vmatpush2.bf16.xpose.msra.mxu0 0
        %1003 = vmatprep.subr.bf16.mxu0 0
        %1004 = vmatpush2.bf16.xpose.msra.mxu0 0
        %1005 = vmatprep.subr.bf16.mxu0 0
        %1006 = vmatpush2.bf16.xpose.msra.mxu0 0
        %1007 = vmatprep.subr.bf16.mxu0 0
        %1008 = vmatpush2.bf16.xpose.msra.mxu0 0
        %1009 = vmatprep.subr.bf16.mxu0 0
        %1010 = vmatpush2.bf16.xpose.msra.mxu0 0
        %1011 = vmatprep.subr.bf16.mxu0 0
        %1012 = vmatpush2.bf16.xpose.msra.mxu0 0
        %1013 = vmatprep.subr.bf16.mxu0 0
        %1014 = vmatpush2.bf16.xpose.msra.mxu0 0
        %1015 = vmatprep.subr.bf16.mxu0 0
        %1016 = vmatpush2.bf16.xpose.msra.mxu0 0
        %1017 = vmatprep.mubr.bf16.mxu0 0
        %1018 = vmatmul.mubr.bf16.gmra.mxu0 %v980
        %v1019 = vpop.f32.mrf.mxu0
        %v1020 = vadd.f32 0.0, %v1019
        %v1021 = vpop.f32.mrf.mxu0
        %v1022 = vpop.f32.mrf.mxu0
        %v1023 = vpop.f32.mrf.mxu0
        %1024 = vdwg.mxu0
        %1026 = vrot.lane.b32.xlu0 %v970, 112
        %v1027 = vpop.permute.xlu0 %1026
        %1029 = vrot.lane.b32.xlu0 %v972, 48
        %v1030 = vpop.permute.xlu0 %1029
        %v1032 = vsel %vm745, %v1027, 0
        %v1035 = vsel %vm745, %v1030, 0
        %1037 = vmatprep.subr.bf16.mxu0 0
        %1038 = vmatpush1.bf16.xpose.msra.mxu0 0
        %1039 = vmatprep.subr.bf16.mxu0 0
        %1040 = vmatpush1.bf16.xpose.msra.mxu0 0
        %1041 = vmatprep.subr.bf16.mxu0 0
        %1042 = vmatpush1.bf16.xpose.msra.mxu0 0
        %1043 = vmatprep.subr.bf16.mxu0 0
        %1044 = vmatpush1.bf16.xpose.msra.mxu0 0
        %1045 = vmatprep.subr.bf16.mxu0 0
        %1046 = vmatpush1.bf16.xpose.msra.mxu0 0
        %1047 = vmatprep.subr.bf16.mxu0 0
        %1048 = vmatpush1.bf16.xpose.msra.mxu0 0
        %1049 = vmatprep.subr.bf16.mxu0 0
        %1050 = vmatpush1.bf16.xpose.msra.mxu0 0
        %1051 = vmatprep.subr.bf16.mxu0 0
        %1052 = vmatpush1.bf16.xpose.msra.mxu0 %v1035
        %1053 = vmatprep.subr.bf16.mxu0 0
        %1054 = vmatpush2.bf16.xpose.msra.mxu0 0
        %1055 = vmatprep.subr.bf16.mxu0 0
        %1056 = vmatpush2.bf16.xpose.msra.mxu0 0
        %1057 = vmatprep.subr.bf16.mxu0 0
        %1058 = vmatpush2.bf16.xpose.msra.mxu0 0
        %1059 = vmatprep.subr.bf16.mxu0 0
        %1060 = vmatpush2.bf16.xpose.msra.mxu0 0
        %1061 = vmatprep.subr.bf16.mxu0 0
        %1062 = vmatpush2.bf16.xpose.msra.mxu0 0
        %1063 = vmatprep.subr.bf16.mxu0 0
        %1064 = vmatpush2.bf16.xpose.msra.mxu0 0
        %1065 = vmatprep.subr.bf16.mxu0 0
        %1066 = vmatpush2.bf16.xpose.msra.mxu0 0
        %1067 = vmatprep.subr.bf16.mxu0 0
        %1068 = vmatpush2.bf16.xpose.msra.mxu0 0
        %1069 = vmatprep.mubr.bf16.mxu0 0
        %1070 = vmatmul.mubr.bf16.gmra.mxu0 %v1032
        %v1071 = vpop.f32.mrf.mxu0
        %v1072 = vadd.f32 0.0, %v1071
        %v1073 = vpop.f32.mrf.mxu0
        %v1074 = vpop.f32.mrf.mxu0
        %v1075 = vpop.f32.mrf.mxu0
        %1076 = vdwg.mxu0
        %v1077 = vsel %vm841, %v1020, -inf
        %1078 = vmax.xlane.f32.xlu0 %v1077
        %v1079 = vpop.xlane.xlu0 %1078
        %v1080 = vsel %vm841, %v1072, -inf
        %1081 = vmax.xlane.f32.xlu0 %v1080
        %v1082 = vpop.xlane.xlu0 %1081
        %v1083 = vsub.f32 %v1020, %v1079
        %v1084 = vsub.f32 %v1072, %v1082
        %v1085 = vmul.f32 %v1083, 1.442695
        %v1086 = vpow.pop %v1085
        %v1087 = vmul.f32 %v1084, 1.442695
        %v1088 = vpow.pop %v1087
        %v1089 = vsel %vm841, %v1086, 0.0
        %1090 = vadd.xlane.f32.xlu0 %v1089
        %v1091 = vpop.xlane.xlu0 %1090
        %v1092 = vsel %vm841, %v1088, 0.0
        %1093 = vadd.xlane.f32.xlu0 %v1092
        %v1094 = vpop.xlane.xlu0 %1093
        %v1095 = vrcp.pop %v1091
        %v1096 = vrcp.pop %v1094
        %v1097 = vmul.f32 %v1086, %v1095
        %v1098 = vmul.f32 %v1088, %v1096
        %v1099 = vpack.c.bf16 %v1097, %v1097
        %v1100 = vpack.c.bf16 %v1098, %v1098
        %v1101 = vpack.c.bf16 %v967, %v967
        %v1102 = vpack.c.bf16 %v968, %v968
        %1104 = vrot.lane.b32.xlu0 %v1101, 112
        %v1105 = vpop.permute.xlu0 %1104
        %v1107 = vsel %vm841, %v1099, 0
        %v1110 = vsel %vm871, %v1105, 0
        %1112 = vmatprep.subr.bf16.mxu0 0
        %1113 = vmatpush1.bf16.msra.mxu0 0
        %1114 = vmatprep.subr.bf16.mxu0 0
        %1115 = vmatpush1.bf16.msra.mxu0 0
        %1116 = vmatprep.subr.bf16.mxu0 0
        %1117 = vmatpush1.bf16.msra.mxu0 0
        %1118 = vmatprep.subr.bf16.mxu0 0
        %1119 = vmatpush1.bf16.msra.mxu0 0
        %1120 = vmatprep.subr.bf16.mxu0 0
        %1121 = vmatpush1.bf16.msra.mxu0 0
        %1122 = vmatprep.subr.bf16.mxu0 0
        %1123 = vmatpush1.bf16.msra.mxu0 0
        %1124 = vmatprep.subr.bf16.mxu0 0
        %1125 = vmatpush1.bf16.msra.mxu0 0
        %1126 = vmatprep.subr.bf16.mxu0 0
        %1127 = vmatpush1.bf16.msra.mxu0 %v1110
        %1128 = vmatprep.subr.bf16.mxu0 0
        %1129 = vmatpush2.bf16.msra.mxu0 0
        %1130 = vmatprep.subr.bf16.mxu0 0
        %1131 = vmatpush2.bf16.msra.mxu0 0
        %1132 = vmatprep.subr.bf16.mxu0 0
        %1133 = vmatpush2.bf16.msra.mxu0 0
        %1134 = vmatprep.subr.bf16.mxu0 0
        %1135 = vmatpush2.bf16.msra.mxu0 0
        %1136 = vmatprep.subr.bf16.mxu0 0
        %1137 = vmatpush2.bf16.msra.mxu0 0
        %1138 = vmatprep.subr.bf16.mxu0 0
        %1139 = vmatpush2.bf16.msra.mxu0 0
        %1140 = vmatprep.subr.bf16.mxu0 0
        %1141 = vmatpush2.bf16.msra.mxu0 0
        %1142 = vmatprep.subr.bf16.mxu0 0
        %1143 = vmatpush2.bf16.msra.mxu0 0
        %1144 = vmatprep.mubr.bf16.mxu0 0
        %1145 = vmatmul.mubr.bf16.gmra.mxu0 %v1107
        %v1146 = vpop.f32.mrf.mxu0
        %v1147 = vadd.f32 0.0, %v1146
        %v1148 = vpop.f32.mrf.mxu0
        %v1149 = vpop.f32.mrf.mxu0
        %v1150 = vpop.f32.mrf.mxu0
        %1151 = vdwg.mxu0
        %1153 = vrot.lane.b32.xlu0 %v1102, 112
        %v1154 = vpop.permute.xlu0 %1153
        %v1156 = vsel %vm841, %v1100, 0
        %v1159 = vsel %vm871, %v1154, 0
        %1161 = vmatprep.subr.bf16.mxu0 0
        %1162 = vmatpush1.bf16.msra.mxu0 0
        %1163 = vmatprep.subr.bf16.mxu0 0
        %1164 = vmatpush1.bf16.msra.mxu0 0
        %1165 = vmatprep.subr.bf16.mxu0 0
        %1166 = vmatpush1.bf16.msra.mxu0 0
        %1167 = vmatprep.subr.bf16.mxu0 0
        %1168 = vmatpush1.bf16.msra.mxu0 0
        %1169 = vmatprep.subr.bf16.mxu0 0
        %1170 = vmatpush1.bf16.msra.mxu0 0
        %1171 = vmatprep.subr.bf16.mxu0 0
        %1172 = vmatpush1.bf16.msra.mxu0 0
        %1173 = vmatprep.subr.bf16.mxu0 0
        %1174 = vmatpush1.bf16.msra.mxu0 0
        %1175 = vmatprep.subr.bf16.mxu0 0
        %1176 = vmatpush1.bf16.msra.mxu0 %v1159
        %1177 = vmatprep.subr.bf16.mxu0 0
        %1178 = vmatpush2.bf16.msra.mxu0 0
        %1179 = vmatprep.subr.bf16.mxu0 0
        %1180 = vmatpush2.bf16.msra.mxu0 0
        %1181 = vmatprep.subr.bf16.mxu0 0
        %1182 = vmatpush2.bf16.msra.mxu0 0
        %1183 = vmatprep.subr.bf16.mxu0 0
        %1184 = vmatpush2.bf16.msra.mxu0 0
        %1185 = vmatprep.subr.bf16.mxu0 0
        %1186 = vmatpush2.bf16.msra.mxu0 0
        %1187 = vmatprep.subr.bf16.mxu0 0
        %1188 = vmatpush2.bf16.msra.mxu0 0
        %1189 = vmatprep.subr.bf16.mxu0 0
        %1190 = vmatpush2.bf16.msra.mxu0 0
        %1191 = vmatprep.subr.bf16.mxu0 0
        %1192 = vmatpush2.bf16.msra.mxu0 0
        %1193 = vmatprep.mubr.bf16.mxu0 0
        %1194 = vmatmul.mubr.bf16.gmra.mxu0 %v1156
        %v1195 = vpop.f32.mrf.mxu0
        %v1196 = vadd.f32 0.0, %v1195
        %v1197 = vpop.f32.mrf.mxu0
        %v1198 = vpop.f32.mrf.mxu0
        %v1199 = vpop.f32.mrf.mxu0
        %1200 = vdwg.mxu0
        %1203 = vrot.lane.b32.xlu0 %v1147, 16
        %v1204 = vpop.permute.xlu0 %1203
        %1205 = vrot.lane.b32.xlu0 %v1196, 16
        %v1206 = vpop.permute.xlu0 %1205
        %vm1209 = vcmask 261248
        %1210 = vst.msk [vmem:[#allocation4] sm:$0xff] %vm1209, %v1204
        %1211 = vst.msk [vmem:[#allocation4 + $0x8] sm:$0xff] %vm1209, %v1206
        %v1212 = vld [vmem:[#allocation3] sm:$0xff]
        %v1213 = vld [vmem:[#allocation3 + $0x10] sm:$0xff]
        %v1214 = vmul.f32 %v1212, 0.25
        %v1215 = vmul.f32 %v1213, 0.25
        %v1216 = vld [vmem:[#allocation3 + $0x8] sm:$0xff]
        %v1217 = vld [vmem:[#allocation3 + $0x18] sm:$0xff]
        %v1218 = vpack.c.bf16 %v1214, %v1214
        %v1219 = vpack.c.bf16 %v1215, %v1215
        %v1220 = vpack.c.bf16 %v1212, %v1212
        %v1221 = vpack.c.bf16 %v1213, %v1213
        %1223 = vrot.lane.b32.xlu0 %v1218, 96
        %v1224 = vpop.permute.xlu0 %1223
        %1226 = vrot.lane.b32.xlu0 %v1220, 32
        %v1227 = vpop.permute.xlu0 %1226
        %v1229 = vsel %vm745, %v1224, 0
        %v1232 = vsel %vm745, %v1227, 0
        %1234 = vmatprep.subr.bf16.mxu0 0
        %1235 = vmatpush1.bf16.xpose.msra.mxu0 0
        %1236 = vmatprep.subr.bf16.mxu0 0
        %1237 = vmatpush1.bf16.xpose.msra.mxu0 0
        %1238 = vmatprep.subr.bf16.mxu0 0
        %1239 = vmatpush1.bf16.xpose.msra.mxu0 0
        %1240 = vmatprep.subr.bf16.mxu0 0
        %1241 = vmatpush1.bf16.xpose.msra.mxu0 0
        %1242 = vmatprep.subr.bf16.mxu0 0
        %1243 = vmatpush1.bf16.xpose.msra.mxu0 0
        %1244 = vmatprep.subr.bf16.mxu0 0
        %1245 = vmatpush1.bf16.xpose.msra.mxu0 0
        %1246 = vmatprep.subr.bf16.mxu0 0
        %1247 = vmatpush1.bf16.xpose.msra.mxu0 0
        %1248 = vmatprep.subr.bf16.mxu0 0
        %1249 = vmatpush1.bf16.xpose.msra.mxu0 %v1232
        %1250 = vmatprep.subr.bf16.mxu0 0
        %1251 = vmatpush2.bf16.xpose.msra.mxu0 0
        %1252 = vmatprep.subr.bf16.mxu0 0
        %1253 = vmatpush2.bf16.xpose.msra.mxu0 0
        %1254 = vmatprep.subr.bf16.mxu0 0
        %1255 = vmatpush2.bf16.xpose.msra.mxu0 0
        %1256 = vmatprep.subr.bf16.mxu0 0
        %1257 = vmatpush2.bf16.xpose.msra.mxu0 0
        %1258 = vmatprep.subr.bf16.mxu0 0
        %1259 = vmatpush2.bf16.xpose.msra.mxu0 0
        %1260 = vmatprep.subr.bf16.mxu0 0
        %1261 = vmatpush2.bf16.xpose.msra.mxu0 0
        %1262 = vmatprep.subr.bf16.mxu0 0
        %1263 = vmatpush2.bf16.xpose.msra.mxu0 0
        %1264 = vmatprep.subr.bf16.mxu0 0
        %1265 = vmatpush2.bf16.xpose.msra.mxu0 0
        %1266 = vmatprep.mubr.bf16.mxu0 0
        %1267 = vmatmul.mubr.bf16.gmra.mxu0 %v1229
        %v1268 = vpop.f32.mrf.mxu0
        %v1269 = vadd.f32 0.0, %v1268
        %v1270 = vpop.f32.mrf.mxu0
        %v1271 = vpop.f32.mrf.mxu0
        %v1272 = vpop.f32.mrf.mxu0
        %1273 = vdwg.mxu0
        %1275 = vrot.lane.b32.xlu0 %v1219, 96
        %v1276 = vpop.permute.xlu0 %1275
        %1278 = vrot.lane.b32.xlu0 %v1221, 32
        %v1279 = vpop.permute.xlu0 %1278
        %v1281 = vsel %vm745, %v1276, 0
        %v1284 = vsel %vm745, %v1279, 0
        %1286 = vmatprep.subr.bf16.mxu0 0
        %1287 = vmatpush1.bf16.xpose.msra.mxu0 0
        %1288 = vmatprep.subr.bf16.mxu0 0
        %1289 = vmatpush1.bf16.xpose.msra.mxu0 0
        %1290 = vmatprep.subr.bf16.mxu0 0
        %1291 = vmatpush1.bf16.xpose.msra.mxu0 0
        %1292 = vmatprep.subr.bf16.mxu0 0
        %1293 = vmatpush1.bf16.xpose.msra.mxu0 0
        %1294 = vmatprep.subr.bf16.mxu0 0
        %1295 = vmatpush1.bf16.xpose.msra.mxu0 0
        %1296 = vmatprep.subr.bf16.mxu0 0
        %1297 = vmatpush1.bf16.xpose.msra.mxu0 0
        %1298 = vmatprep.subr.bf16.mxu0 0
        %1299 = vmatpush1.bf16.xpose.msra.mxu0 0
        %1300 = vmatprep.subr.bf16.mxu0 0
        %1301 = vmatpush1.bf16.xpose.msra.mxu0 %v1284
        %1302 = vmatprep.subr.bf16.mxu0 0
        %1303 = vmatpush2.bf16.xpose.msra.mxu0 0
        %1304 = vmatprep.subr.bf16.mxu0 0
        %1305 = vmatpush2.bf16.xpose.msra.mxu0 0
        %1306 = vmatprep.subr.bf16.mxu0 0
        %1307 = vmatpush2.bf16.xpose.msra.mxu0 0
        %1308 = vmatprep.subr.bf16.mxu0 0
        %1309 = vmatpush2.bf16.xpose.msra.mxu0 0
        %1310 = vmatprep.subr.bf16.mxu0 0
        %1311 = vmatpush2.bf16.xpose.msra.mxu0 0
        %1312 = vmatprep.subr.bf16.mxu0 0
        %1313 = vmatpush2.bf16.xpose.msra.mxu0 0
        %1314 = vmatprep.subr.bf16.mxu0 0
        %1315 = vmatpush2.bf16.xpose.msra.mxu0 0
        %1316 = vmatprep.subr.bf16.mxu0 0
        %1317 = vmatpush2.bf16.xpose.msra.mxu0 0
        %1318 = vmatprep.mubr.bf16.mxu0 0
        %1319 = vmatmul.mubr.bf16.gmra.mxu0 %v1281
        %v1320 = vpop.f32.mrf.mxu0
        %v1321 = vadd.f32 0.0, %v1320
        %v1322 = vpop.f32.mrf.mxu0
        %v1323 = vpop.f32.mrf.mxu0
        %v1324 = vpop.f32.mrf.mxu0
        %1325 = vdwg.mxu0
        %v1326 = vsel %vm841, %v1269, -inf
        %1327 = vmax.xlane.f32.xlu0 %v1326
        %v1328 = vpop.xlane.xlu0 %1327
        %v1329 = vsel %vm841, %v1321, -inf
        %1330 = vmax.xlane.f32.xlu0 %v1329
        %v1331 = vpop.xlane.xlu0 %1330
        %v1332 = vsub.f32 %v1269, %v1328
        %v1333 = vsub.f32 %v1321, %v1331
        %v1334 = vmul.f32 %v1332, 1.442695
        %v1335 = vpow.pop %v1334
        %v1336 = vmul.f32 %v1333, 1.442695
        %v1337 = vpow.pop %v1336
        %v1338 = vsel %vm841, %v1335, 0.0
        %1339 = vadd.xlane.f32.xlu0 %v1338
        %v1340 = vpop.xlane.xlu0 %1339
        %v1341 = vsel %vm841, %v1337, 0.0
        %1342 = vadd.xlane.f32.xlu0 %v1341
        %v1343 = vpop.xlane.xlu0 %1342
        %v1344 = vrcp.pop %v1340
        %v1345 = vrcp.pop %v1343
        %v1346 = vmul.f32 %v1335, %v1344
        %v1347 = vmul.f32 %v1337, %v1345
        %v1348 = vpack.c.bf16 %v1346, %v1346
        %v1349 = vpack.c.bf16 %v1347, %v1347
        %v1350 = vpack.c.bf16 %v1216, %v1216
        %v1351 = vpack.c.bf16 %v1217, %v1217
        %1353 = vrot.lane.b32.xlu0 %v1350, 96
        %v1354 = vpop.permute.xlu0 %1353
        %v1356 = vsel %vm841, %v1348, 0
        %v1359 = vsel %vm871, %v1354, 0
        %1361 = vmatprep.subr.bf16.mxu0 0
        %1362 = vmatpush1.bf16.msra.mxu0 0
        %1363 = vmatprep.subr.bf16.mxu0 0
        %1364 = vmatpush1.bf16.msra.mxu0 0
        %1365 = vmatprep.subr.bf16.mxu0 0
        %1366 = vmatpush1.bf16.msra.mxu0 0
        %1367 = vmatprep.subr.bf16.mxu0 0
        %1368 = vmatpush1.bf16.msra.mxu0 0
        %1369 = vmatprep.subr.bf16.mxu0 0
        %1370 = vmatpush1.bf16.msra.mxu0 0
        %1371 = vmatprep.subr.bf16.mxu0 0
        %1372 = vmatpush1.bf16.msra.mxu0 0
        %1373 = vmatprep.subr.bf16.mxu0 0
        %1374 = vmatpush1.bf16.msra.mxu0 0
        %1375 = vmatprep.subr.bf16.mxu0 0
        %1376 = vmatpush1.bf16.msra.mxu0 %v1359
        %1377 = vmatprep.subr.bf16.mxu0 0
        %1378 = vmatpush2.bf16.msra.mxu0 0
        %1379 = vmatprep.subr.bf16.mxu0 0
        %1380 = vmatpush2.bf16.msra.mxu0 0
        %1381 = vmatprep.subr.bf16.mxu0 0
        %1382 = vmatpush2.bf16.msra.mxu0 0
        %1383 = vmatprep.subr.bf16.mxu0 0
        %1384 = vmatpush2.bf16.msra.mxu0 0
        %1385 = vmatprep.subr.bf16.mxu0 0
        %1386 = vmatpush2.bf16.msra.mxu0 0
        %1387 = vmatprep.subr.bf16.mxu0 0
        %1388 = vmatpush2.bf16.msra.mxu0 0
        %1389 = vmatprep.subr.bf16.mxu0 0
        %1390 = vmatpush2.bf16.msra.mxu0 0
        %1391 = vmatprep.subr.bf16.mxu0 0
        %1392 = vmatpush2.bf16.msra.mxu0 0
        %1393 = vmatprep.mubr.bf16.mxu0 0
        %1394 = vmatmul.mubr.bf16.gmra.mxu0 %v1356
        %v1395 = vpop.f32.mrf.mxu0
        %v1396 = vadd.f32 0.0, %v1395
        %v1397 = vpop.f32.mrf.mxu0
        %v1398 = vpop.f32.mrf.mxu0
        %v1399 = vpop.f32.mrf.mxu0
        %1400 = vdwg.mxu0
        %1402 = vrot.lane.b32.xlu0 %v1351, 96
        %v1403 = vpop.permute.xlu0 %1402
        %v1405 = vsel %vm841, %v1349, 0
        %v1408 = vsel %vm871, %v1403, 0
        %1410 = vmatprep.subr.bf16.mxu0 0
        %1411 = vmatpush1.bf16.msra.mxu0 0
        %1412 = vmatprep.subr.bf16.mxu0 0
        %1413 = vmatpush1.bf16.msra.mxu0 0
        %1414 = vmatprep.subr.bf16.mxu0 0
        %1415 = vmatpush1.bf16.msra.mxu0 0
        %1416 = vmatprep.subr.bf16.mxu0 0
        %1417 = vmatpush1.bf16.msra.mxu0 0
        %1418 = vmatprep.subr.bf16.mxu0 0
        %1419 = vmatpush1.bf16.msra.mxu0 0
        %1420 = vmatprep.subr.bf16.mxu0 0
        %1421 = vmatpush1.bf16.msra.mxu0 0
        %1422 = vmatprep.subr.bf16.mxu0 0
        %1423 = vmatpush1.bf16.msra.mxu0 0
        %1424 = vmatprep.subr.bf16.mxu0 0
        %1425 = vmatpush1.bf16.msra.mxu0 %v1408
        %1426 = vmatprep.subr.bf16.mxu0 0
        %1427 = vmatpush2.bf16.msra.mxu0 0
        %1428 = vmatprep.subr.bf16.mxu0 0
        %1429 = vmatpush2.bf16.msra.mxu0 0
        %1430 = vmatprep.subr.bf16.mxu0 0
        %1431 = vmatpush2.bf16.msra.mxu0 0
        %1432 = vmatprep.subr.bf16.mxu0 0
        %1433 = vmatpush2.bf16.msra.mxu0 0
        %1434 = vmatprep.subr.bf16.mxu0 0
        %1435 = vmatpush2.bf16.msra.mxu0 0
        %1436 = vmatprep.subr.bf16.mxu0 0
        %1437 = vmatpush2.bf16.msra.mxu0 0
        %1438 = vmatprep.subr.bf16.mxu0 0
        %1439 = vmatpush2.bf16.msra.mxu0 0
        %1440 = vmatprep.subr.bf16.mxu0 0
        %1441 = vmatpush2.bf16.msra.mxu0 0
        %1442 = vmatprep.mubr.bf16.mxu0 0
        %1443 = vmatmul.mubr.bf16.gmra.mxu0 %v1405
        %v1444 = vpop.f32.mrf.mxu0
        %v1445 = vadd.f32 0.0, %v1444
        %v1446 = vpop.f32.mrf.mxu0
        %v1447 = vpop.f32.mrf.mxu0
        %v1448 = vpop.f32.mrf.mxu0
        %1449 = vdwg.mxu0
        %1452 = vrot.lane.b32.xlu0 %v1396, 32
        %v1453 = vpop.permute.xlu0 %1452
        %1454 = vrot.lane.b32.xlu0 %v1445, 32
        %v1455 = vpop.permute.xlu0 %1454
        %vm1458 = vcmask 392448
        %1459 = vst.msk [vmem:[#allocation4] sm:$0xff] %vm1458, %v1453
        %1460 = vst.msk [vmem:[#allocation4 + $0x8] sm:$0xff] %vm1458, %v1455
        %v1461 = vld [vmem:[#allocation3] sm:$0xff]
        %v1462 = vld [vmem:[#allocation3 + $0x10] sm:$0xff]
        %v1463 = vmul.f32 %v1461, 0.25
        %v1464 = vmul.f32 %v1462, 0.25
        %v1465 = vld [vmem:[#allocation3 + $0x8] sm:$0xff]
        %v1466 = vld [vmem:[#allocation3 + $0x18] sm:$0xff]
        %v1467 = vpack.c.bf16 %v1463, %v1463
        %v1468 = vpack.c.bf16 %v1464, %v1464
        %v1469 = vpack.c.bf16 %v1461, %v1461
        %v1470 = vpack.c.bf16 %v1462, %v1462
        %1472 = vrot.lane.b32.xlu0 %v1467, 80
        %v1473 = vpop.permute.xlu0 %1472
        %1475 = vrot.lane.b32.xlu0 %v1469, 16
        %v1476 = vpop.permute.xlu0 %1475
        %v1478 = vsel %vm745, %v1473, 0
        %v1481 = vsel %vm745, %v1476, 0
        %1483 = vmatprep.subr.bf16.mxu0 0
        %1484 = vmatpush1.bf16.xpose.msra.mxu0 0
        %1485 = vmatprep.subr.bf16.mxu0 0
        %1486 = vmatpush1.bf16.xpose.msra.mxu0 0
        %1487 = vmatprep.subr.bf16.mxu0 0
        %1488 = vmatpush1.bf16.xpose.msra.mxu0 0
        %1489 = vmatprep.subr.bf16.mxu0 0
        %1490 = vmatpush1.bf16.xpose.msra.mxu0 0
        %1491 = vmatprep.subr.bf16.mxu0 0
        %1492 = vmatpush1.bf16.xpose.msra.mxu0 0
        %1493 = vmatprep.subr.bf16.mxu0 0
        %1494 = vmatpush1.bf16.xpose.msra.mxu0 0
        %1495 = vmatprep.subr.bf16.mxu0 0
        %1496 = vmatpush1.bf16.xpose.msra.mxu0 0
        %1497 = vmatprep.subr.bf16.mxu0 0
        %1498 = vmatpush1.bf16.xpose.msra.mxu0 %v1481
        %1499 = vmatprep.subr.bf16.mxu0 0
        %1500 = vmatpush2.bf16.xpose.msra.mxu0 0
        %1501 = vmatprep.subr.bf16.mxu0 0
        %1502 = vmatpush2.bf16.xpose.msra.mxu0 0
        %1503 = vmatprep.subr.bf16.mxu0 0
        %1504 = vmatpush2.bf16.xpose.msra.mxu0 0
        %1505 = vmatprep.subr.bf16.mxu0 0
        %1506 = vmatpush2.bf16.xpose.msra.mxu0 0
        %1507 = vmatprep.subr.bf16.mxu0 0
        %1508 = vmatpush2.bf16.xpose.msra.mxu0 0
        %1509 = vmatprep.subr.bf16.mxu0 0
        %1510 = vmatpush2.bf16.xpose.msra.mxu0 0
        %1511 = vmatprep.subr.bf16.mxu0 0
        %1512 = vmatpush2.bf16.xpose.msra.mxu0 0
        %1513 = vmatprep.subr.bf16.mxu0 0
        %1514 = vmatpush2.bf16.xpose.msra.mxu0 0
        %1515 = vmatprep.mubr.bf16.mxu0 0
        %1516 = vmatmul.mubr.bf16.gmra.mxu0 %v1478
        %v1517 = vpop.f32.mrf.mxu0
        %v1518 = vadd.f32 0.0, %v1517
        %v1519 = vpop.f32.mrf.mxu0
        %v1520 = vpop.f32.mrf.mxu0
        %v1521 = vpop.f32.mrf.mxu0
        %1522 = vdwg.mxu0
        %1524 = vrot.lane.b32.xlu0 %v1468, 80
        %v1525 = vpop.permute.xlu0 %1524
        %1527 = vrot.lane.b32.xlu0 %v1470, 16
        %v1528 = vpop.permute.xlu0 %1527
        %v1530 = vsel %vm745, %v1525, 0
        %v1533 = vsel %vm745, %v1528, 0
        %1535 = vmatprep.subr.bf16.mxu0 0
        %1536 = vmatpush1.bf16.xpose.msra.mxu0 0
        %1537 = vmatprep.subr.bf16.mxu0 0
        %1538 = vmatpush1.bf16.xpose.msra.mxu0 0
        %1539 = vmatprep.subr.bf16.mxu0 0
        %1540 = vmatpush1.bf16.xpose.msra.mxu0 0
        %1541 = vmatprep.subr.bf16.mxu0 0
        %1542 = vmatpush1.bf16.xpose.msra.mxu0 0
        %1543 = vmatprep.subr.bf16.mxu0 0
        %1544 = vmatpush1.bf16.xpose.msra.mxu0 0
        %1545 = vmatprep.subr.bf16.mxu0 0
        %1546 = vmatpush1.bf16.xpose.msra.mxu0 0
        %1547 = vmatprep.subr.bf16.mxu0 0
        %1548 = vmatpush1.bf16.xpose.msra.mxu0 0
        %1549 = vmatprep.subr.bf16.mxu0 0
        %1550 = vmatpush1.bf16.xpose.msra.mxu0 %v1533
        %1551 = vmatprep.subr.bf16.mxu0 0
        %1552 = vmatpush2.bf16.xpose.msra.mxu0 0
        %1553 = vmatprep.subr.bf16.mxu0 0
        %1554 = vmatpush2.bf16.xpose.msra.mxu0 0
        %1555 = vmatprep.subr.bf16.mxu0 0
        %1556 = vmatpush2.bf16.xpose.msra.mxu0 0
        %1557 = vmatprep.subr.bf16.mxu0 0
        %1558 = vmatpush2.bf16.xpose.msra.mxu0 0
        %1559 = vmatprep.subr.bf16.mxu0 0
        %1560 = vmatpush2.bf16.xpose.msra.mxu0 0
        %1561 = vmatprep.subr.bf16.mxu0 0
        %1562 = vmatpush2.bf16.xpose.msra.mxu0 0
        %1563 = vmatprep.subr.bf16.mxu0 0
        %1564 = vmatpush2.bf16.xpose.msra.mxu0 0
        %1565 = vmatprep.subr.bf16.mxu0 0
        %1566 = vmatpush2.bf16.xpose.msra.mxu0 0
        %1567 = vmatprep.mubr.bf16.mxu0 0
        %1568 = vmatmul.mubr.bf16.gmra.mxu0 %v1530
        %v1569 = vpop.f32.mrf.mxu0
        %v1570 = vadd.f32 0.0, %v1569
        %v1571 = vpop.f32.mrf.mxu0
        %v1572 = vpop.f32.mrf.mxu0
        %v1573 = vpop.f32.mrf.mxu0
        %1574 = vdwg.mxu0
        %v1575 = vsel %vm841, %v1518, -inf
        %1576 = vmax.xlane.f32.xlu0 %v1575
        %v1577 = vpop.xlane.xlu0 %1576
        %v1578 = vsel %vm841, %v1570, -inf
        %1579 = vmax.xlane.f32.xlu0 %v1578
        %v1580 = vpop.xlane.xlu0 %1579
        %v1581 = vsub.f32 %v1518, %v1577
        %v1582 = vsub.f32 %v1570, %v1580
        %v1583 = vmul.f32 %v1581, 1.442695
        %v1584 = vpow.pop %v1583
        %v1585 = vmul.f32 %v1582, 1.442695
        %v1586 = vpow.pop %v1585
        %v1587 = vsel %vm841, %v1584, 0.0
        %1588 = vadd.xlane.f32.xlu0 %v1587
        %v1589 = vpop.xlane.xlu0 %1588
        %v1590 = vsel %vm841, %v1586, 0.0
        %1591 = vadd.xlane.f32.xlu0 %v1590
        %v1592 = vpop.xlane.xlu0 %1591
        %v1593 = vrcp.pop %v1589
        %v1594 = vrcp.pop %v1592
        %v1595 = vmul.f32 %v1584, %v1593
        %v1596 = vmul.f32 %v1586, %v1594
        %v1597 = vpack.c.bf16 %v1595, %v1595
        %v1598 = vpack.c.bf16 %v1596, %v1596
        %v1599 = vpack.c.bf16 %v1465, %v1465
        %v1600 = vpack.c.bf16 %v1466, %v1466
        %1602 = vrot.lane.b32.xlu0 %v1599, 80
        %v1603 = vpop.permute.xlu0 %1602
        %v1605 = vsel %vm841, %v1597, 0
        %v1608 = vsel %vm871, %v1603, 0
        %1610 = vmatprep.subr.bf16.mxu0 0
        %1611 = vmatpush1.bf16.msra.mxu0 0
        %1612 = vmatprep.subr.bf16.mxu0 0
        %1613 = vmatpush1.bf16.msra.mxu0 0
        %1614 = vmatprep.subr.bf16.mxu0 0
        %1615 = vmatpush1.bf16.msra.mxu0 0
        %1616 = vmatprep.subr.bf16.mxu0 0
        %1617 = vmatpush1.bf16.msra.mxu0 0
        %1618 = vmatprep.subr.bf16.mxu0 0
        %1619 = vmatpush1.bf16.msra.mxu0 0
        %1620 = vmatprep.subr.bf16.mxu0 0
        %1621 = vmatpush1.bf16.msra.mxu0 0
        %1622 = vmatprep.subr.bf16.mxu0 0
        %1623 = vmatpush1.bf16.msra.mxu0 0
        %1624 = vmatprep.subr.bf16.mxu0 0
        %1625 = vmatpush1.bf16.msra.mxu0 %v1608
        %1626 = vmatprep.subr.bf16.mxu0 0
        %1627 = vmatpush2.bf16.msra.mxu0 0
        %1628 = vmatprep.subr.bf16.mxu0 0
        %1629 = vmatpush2.bf16.msra.mxu0 0
        %1630 = vmatprep.subr.bf16.mxu0 0
        %1631 = vmatpush2.bf16.msra.mxu0 0
        %1632 = vmatprep.subr.bf16.mxu0 0
        %1633 = vmatpush2.bf16.msra.mxu0 0
        %1634 = vmatprep.subr.bf16.mxu0 0
        %1635 = vmatpush2.bf16.msra.mxu0 0
        %1636 = vmatprep.subr.bf16.mxu0 0
        %1637 = vmatpush2.bf16.msra.mxu0 0
        %1638 = vmatprep.subr.bf16.mxu0 0
        %1639 = vmatpush2.bf16.msra.mxu0 0
        %1640 = vmatprep.subr.bf16.mxu0 0
        %1641 = vmatpush2.bf16.msra.mxu0 0
        %1642 = vmatprep.mubr.bf16.mxu0 0
        %1643 = vmatmul.mubr.bf16.gmra.mxu0 %v1605
        %v1644 = vpop.f32.mrf.mxu0
        %v1645 = vadd.f32 0.0, %v1644
        %v1646 = vpop.f32.mrf.mxu0
        %v1647 = vpop.f32.mrf.mxu0
        %v1648 = vpop.f32.mrf.mxu0
        %1649 = vdwg.mxu0
        %1651 = vrot.lane.b32.xlu0 %v1600, 80
        %v1652 = vpop.permute.xlu0 %1651
        %v1654 = vsel %vm841, %v1598, 0
        %v1657 = vsel %vm871, %v1652, 0
        %1659 = vmatprep.subr.bf16.mxu0 0
        %1660 = vmatpush1.bf16.msra.mxu0 0
        %1661 = vmatprep.subr.bf16.mxu0 0
        %1662 = vmatpush1.bf16.msra.mxu0 0
        %1663 = vmatprep.subr.bf16.mxu0 0
        %1664 = vmatpush1.bf16.msra.mxu0 0
        %1665 = vmatprep.subr.bf16.mxu0 0
        %1666 = vmatpush1.bf16.msra.mxu0 0
        %1667 = vmatprep.subr.bf16.mxu0 0
        %1668 = vmatpush1.bf16.msra.mxu0 0
        %1669 = vmatprep.subr.bf16.mxu0 0
        %1670 = vmatpush1.bf16.msra.mxu0 0
        %1671 = vmatprep.subr.bf16.mxu0 0
        %1672 = vmatpush1.bf16.msra.mxu0 0
        %1673 = vmatprep.subr.bf16.mxu0 0
        %1674 = vmatpush1.bf16.msra.mxu0 %v1657
        %1675 = vmatprep.subr.bf16.mxu0 0
        %1676 = vmatpush2.bf16.msra.mxu0 0
        %1677 = vmatprep.subr.bf16.mxu0 0
        %1678 = vmatpush2.bf16.msra.mxu0 0
        %1679 = vmatprep.subr.bf16.mxu0 0
        %1680 = vmatpush2.bf16.msra.mxu0 0
        %1681 = vmatprep.subr.bf16.mxu0 0
        %1682 = vmatpush2.bf16.msra.mxu0 0
        %1683 = vmatprep.subr.bf16.mxu0 0
        %1684 = vmatpush2.bf16.msra.mxu0 0
        %1685 = vmatprep.subr.bf16.mxu0 0
        %1686 = vmatpush2.bf16.msra.mxu0 0
        %1687 = vmatprep.subr.bf16.mxu0 0
        %1688 = vmatpush2.bf16.msra.mxu0 0
        %1689 = vmatprep.subr.bf16.mxu0 0
        %1690 = vmatpush2.bf16.msra.mxu0 0
        %1691 = vmatprep.mubr.bf16.mxu0 0
        %1692 = vmatmul.mubr.bf16.gmra.mxu0 %v1654
        %v1693 = vpop.f32.mrf.mxu0
        %v1694 = vadd.f32 0.0, %v1693
        %v1695 = vpop.f32.mrf.mxu0
        %v1696 = vpop.f32.mrf.mxu0
        %v1697 = vpop.f32.mrf.mxu0
        %1698 = vdwg.mxu0
        %1701 = vrot.lane.b32.xlu0 %v1645, 48
        %v1702 = vpop.permute.xlu0 %1701
        %1703 = vrot.lane.b32.xlu0 %v1694, 48
        %v1704 = vpop.permute.xlu0 %1703
        %vm1707 = vcmask 523648
        %1708 = vst.msk [vmem:[#allocation4] sm:$0xff] %vm1707, %v1702
        %1709 = vst.msk [vmem:[#allocation4 + $0x8] sm:$0xff] %vm1707, %v1704
        %v1710 = vld [vmem:[#allocation4] sm:$0xff]
        %v1711 = vld [vmem:[#allocation4 + $0x8] sm:$0xff]
        %v1712 = vpack.c.bf16 %v1711, %v1710
        %v1713 = vld [vmem:[%s571] sm:$0xf]
        %v1714 = vld [vmem:[%s571 + $0x4] sm:$0xf]
        %v1715 = vld [vmem:[%s571 + $0x8] sm:$0xf]
        %v1716 = vld [vmem:[%s571 + $0xc] sm:$0xf]
        %v1717 = vld [vmem:[%s571 + $0x10] sm:$0xf]
        %v1718 = vld [vmem:[%s571 + $0x14] sm:$0xf]
        %v1719 = vld [vmem:[%s571 + $0x18] sm:$0xf]
        %v1720 = vld [vmem:[%s571 + $0x1c] sm:$0xf]
        %v1729 = vunpack.c.l.b16 %v1713
        %v1730 = vunpack.c.l.b16 %v1714
        %v1731 = vunpack.c.l.b16 %v1715
        %v1732 = vunpack.c.l.b16 %v1716
        %v1733 = vunpack.c.l.b16 %v1717
        %v1734 = vunpack.c.l.b16 %v1718
        %v1735 = vunpack.c.l.b16 %v1719
        %v1736 = vunpack.c.l.b16 %v1720
        %v1737 = vpack.c.b16 %v1730, %v1729
        %v1738 = vpack.c.b16 %v1732, %v1731
        %v1739 = vpack.c.b16 %v1734, %v1733
        %v1740 = vpack.c.b16 %v1736, %v1735
        %v1746 = vsel %vm728, %v1712, 0
        %1748 = vmatprep.subr.bf16.mxu0 0
        %1749 = vmatpush1.bf16.msra.mxu0 0
        %1750 = vmatprep.subr.bf16.mxu0 0
        %1751 = vmatpush1.bf16.msra.mxu0 0
        %1752 = vmatprep.subr.bf16.mxu0 0
        %1753 = vmatpush1.bf16.msra.mxu0 0
        %1754 = vmatprep.subr.bf16.mxu0 0
        %1755 = vmatpush1.bf16.msra.mxu0 0
        %1756 = vmatprep.subr.bf16.mxu0 0
        %1757 = vmatpush1.bf16.msra.mxu0 %v1740
        %1758 = vmatprep.subr.bf16.mxu0 0
        %1759 = vmatpush1.bf16.msra.mxu0 %v1739
        %1760 = vmatprep.subr.bf16.mxu0 0
        %1761 = vmatpush1.bf16.msra.mxu0 %v1738
        %1762 = vmatprep.subr.bf16.mxu0 0
        %1763 = vmatpush1.bf16.msra.mxu0 %v1737
        %1764 = vmatprep.subr.bf16.mxu0 0
        %1765 = vmatpush2.bf16.msra.mxu0 0
        %1766 = vmatprep.subr.bf16.mxu0 0
        %1767 = vmatpush2.bf16.msra.mxu0 0
        %1768 = vmatprep.subr.bf16.mxu0 0
        %1769 = vmatpush2.bf16.msra.mxu0 0
        %1770 = vmatprep.subr.bf16.mxu0 0
        %1771 = vmatpush2.bf16.msra.mxu0 0
        %1772 = vmatprep.subr.bf16.mxu0 0
        %1773 = vmatpush2.bf16.msra.mxu0 0
        %1774 = vmatprep.subr.bf16.mxu0 0
        %1775 = vmatpush2.bf16.msra.mxu0 0
        %1776 = vmatprep.subr.bf16.mxu0 0
        %1777 = vmatpush2.bf16.msra.mxu0 0
        %1778 = vmatprep.subr.bf16.mxu0 0
        %1779 = vmatpush2.bf16.msra.mxu0 0
        %1780 = vmatprep.mubr.bf16.mxu0 0
        %1781 = vmatmul.mubr.bf16.gmra.mxu0 %v1746
        %v1782 = vpop.f32.mrf.mxu0
        %v1783 = vadd.f32 0.0, %v1782
        %v1784 = vpop.f32.mrf.mxu0
        %v1785 = vpop.f32.mrf.mxu0
        %v1786 = vadd.f32 0.0, %v1785
        %v1787 = vpop.f32.mrf.mxu0
        %1788 = vdwg.mxu0
        %v1789 = vadd.f32 %v608, %v1783
        %v1790 = vadd.f32 %v609, %v1786
        %v1791 = vld [vmem:[%s574] sm:$0x1]
        %v1793 = vlaneseq
        %v1794 = vshrl.u32 %v1793, 7
        %v1795 = vsub.s32 0, %v1794
        %v1796 = vrot.slane %v1791, %v1795
        %v1798 = vadd.f32 %v1789, %v1796
        %v1799 = vadd.f32 %v1790, %v1796
        %v1800 = vld [vmem:[%s577] sm:$0x1]
        %v1801 = vld [vmem:[%s580] sm:$0x1]
        %v1802 = vsel %vm612, %v1798, 0.0
        %1803 = vadd.xlane.f32.xlu0 %v1802
        %v1804 = vpop.xlane.xlu0 %1803
        %v1805 = vsel %vm612, %v1799, 0.0
        %1806 = vadd.xlane.f32.xlu0 %v1805
        %v1807 = vpop.xlane.xlu0 %1806
        %v1808 = vmul.f32 %v1804, %v619
        %v1809 = vmul.f32 %v1807, %v619
        %v1810 = vsub.f32 %v1798, %v1808
        %v1811 = vsub.f32 %v1799, %v1809
        %v1812 = vmul.f32 %v1810, %v1810
        %v1813 = vmul.f32 %v1811, %v1811
        %v1814 = vsel %vm612, %v1812, 0.0
        %1815 = vadd.xlane.f32.xlu0 %v1814
        %v1816 = vpop.xlane.xlu0 %1815
        %v1817 = vsel %vm612, %v1813, 0.0
        %1818 = vadd.xlane.f32.xlu0 %v1817
        %v1819 = vpop.xlane.xlu0 %1818
        %v1820 = vmul.f32 %v1816, %v619
        %v1821 = vmul.f32 %v1819, %v619
        %v1822 = vadd.f32 %v1820, 1e-05
        %v1823 = vadd.f32 %v1821, 1e-05
        %v1824 = vrsqrt.pop %v1822
        %v1825 = vrsqrt.pop %v1823
        %v1826 = vmul.f32 %v1810, %v1824
        %v1827 = vmul.f32 %v1811, %v1825
        %v1829 = vlaneseq
        %v1830 = vshrl.u32 %v1829, 7
        %v1831 = vsub.s32 0, %v1830
        %v1832 = vrot.slane %v1800, %v1831
        %v1834 = vmul.f32 %v1826, %v1832
        %v1835 = vmul.f32 %v1827, %v1832
        %v1837 = vlaneseq
        %v1838 = vshrl.u32 %v1837, 7
        %v1839 = vsub.s32 0, %v1838
        %v1840 = vrot.slane %v1801, %v1839
        %v1842 = vadd.f32 %v1834, %v1840
        %v1843 = vadd.f32 %v1835, %v1840
        %v1844 = vpack.c.bf16 %v1843, %v1842
        %v1845 = vld [vmem:[%s585] sm:$0xf]
        %v1846 = vld [vmem:[%s585 + $0x4] sm:$0xf]
        %v1847 = vld [vmem:[%s585 + $0x8] sm:$0xf]
        %v1848 = vld [vmem:[%s585 + $0xc] sm:$0xf]
        %v1849 = vld [vmem:[%s588] sm:$0x1]
        %v1851 = vlaneseq
        %v1852 = vshrl.u32 %v1851, 7
        %v1853 = vsub.s32 0, %v1852
        %v1854 = vrot.slane %v1849, %v1853
        %v1860 = vunpack.c.l.b16 %v1845
        %v1861 = vunpack.c.l.b16 %v1846
        %v1862 = vunpack.c.l.b16 %v1847
        %v1863 = vunpack.c.l.b16 %v1848
        %v1864 = vpack.c.b16 %v1861, %v1860
        %v1865 = vpack.c.b16 %v1863, %v1862
        %v1869 = vsel %vm612, %v1844, 0
        %1871 = vmatprep.subr.bf16.mxu0 0
        %1872 = vmatpush1.bf16.msra.mxu0 0
        %1873 = vmatprep.subr.bf16.mxu0 0
        %1874 = vmatpush1.bf16.msra.mxu0 0
        %1875 = vmatprep.subr.bf16.mxu0 0
        %1876 = vmatpush1.bf16.msra.mxu0 0
        %1877 = vmatprep.subr.bf16.mxu0 0
        %1878 = vmatpush1.bf16.msra.mxu0 0
        %1879 = vmatprep.subr.bf16.mxu0 0
        %1880 = vmatpush1.bf16.msra.mxu0 0
        %1881 = vmatprep.subr.bf16.mxu0 0
        %1882 = vmatpush1.bf16.msra.mxu0 0
        %1883 = vmatprep.subr.bf16.mxu0 0
        %1884 = vmatpush1.bf16.msra.mxu0 %v1865
        %1885 = vmatprep.subr.bf16.mxu0 0
        %1886 = vmatpush1.bf16.msra.mxu0 %v1864
        %1887 = vmatprep.subr.bf16.mxu0 0
        %1888 = vmatpush2.bf16.msra.mxu0 0
        %1889 = vmatprep.subr.bf16.mxu0 0
        %1890 = vmatpush2.bf16.msra.mxu0 0
        %1891 = vmatprep.subr.bf16.mxu0 0
        %1892 = vmatpush2.bf16.msra.mxu0 0
        %1893 = vmatprep.subr.bf16.mxu0 0
        %1894 = vmatpush2.bf16.msra.mxu0 0
        %1895 = vmatprep.subr.bf16.mxu0 0
        %1896 = vmatpush2.bf16.msra.mxu0 0
        %1897 = vmatprep.subr.bf16.mxu0 0
        %1898 = vmatpush2.bf16.msra.mxu0 0
        %1899 = vmatprep.subr.bf16.mxu0 0
        %1900 = vmatpush2.bf16.msra.mxu0 0
        %1901 = vmatprep.subr.bf16.mxu0 0
        %1902 = vmatpush2.bf16.msra.mxu0 0
        %1903 = vmatprep.mubr.bf16.mxu0 0
        %1904 = vmatmul.mubr.bf16.gmra.mxu0 %v1869
        %v1905 = vpop.f32.mrf.mxu0
        %v1906 = vadd.f32 %v1854, %v1905
        %v1907 = vpop.f32.mrf.mxu0
        %v1908 = vpop.f32.mrf.mxu0
        %v1909 = vadd.f32 %v1854, %v1908
        %v1910 = vpop.f32.mrf.mxu0
        %1911 = vdwg.mxu0
        %v1912 = vmul.f32 %v1906, 0.5
        %v1913 = vmul.f32 %v1909, 0.5
        %v1914 = vmul.f32 %v1906, 0.70710677
        %v1915 = vmul.f32 %v1909, 0.70710677
        %v1916 = vand.u32 2147483647, %v1914
        %v1917 = vand.u32 2147483647, %v1915
        %v1918 = vmul.f32 %v1916, 0.3275911
        %v1919 = vmul.f32 %v1917, 0.3275911
        %v1920 = vadd.f32 %v1918, 1.0
        %v1921 = vadd.f32 %v1919, 1.0
        %v1922 = vrcp.pop %v1920
        %v1923 = vmul.f32 1.0, %v1922
        %v1924 = vrcp.pop %v1921
        %v1925 = vmul.f32 1.0, %v1924
        %v1926 = vmul.f32 %v1923, 1.0614054
        %v1927 = vmul.f32 %v1925, 1.0614054
        %v1928 = vadd.f32 %v1926, -1.4531521
        %v1929 = vadd.f32 %v1927, -1.4531521
        %v1930 = vmul.f32 %v1928, %v1923
        %v1931 = vmul.f32 %v1929, %v1925
        %v1932 = vadd.f32 %v1930, 1.4214138
        %v1933 = vadd.f32 %v1931, 1.4214138
        %v1934 = vmul.f32 %v1932, %v1923
        %v1935 = vmul.f32 %v1933, %v1925
        %v1936 = vadd.f32 %v1934, -0.28449672
        %v1937 = vadd.f32 %v1935, -0.28449672
        %v1938 = vmul.f32 %v1936, %v1923
        %v1939 = vmul.f32 %v1937, %v1925
        %v1940 = vadd.f32 %v1938, 0.2548296
        %v1941 = vadd.f32 %v1939, 0.2548296
        %v1942 = vmul.f32 %v1940, %v1923
        %v1943 = vmul.f32 %v1941, %v1925
        %v1944 = vsub.f32 0.0, %v1916
        %v1945 = vsub.f32 0.0, %v1917
        %v1946 = vmul.f32 %v1944, %v1916
        %v1947 = vmul.f32 %v1945, %v1917
        %v1948 = vmul.f32 %v1946, 1.442695
        %v1949 = vpow.pop %v1948
        %v1950 = vmul.f32 %v1947, 1.442695
        %v1951 = vpow.pop %v1950
        %v1952 = vmul.f32 %v1942, %v1949
        %v1953 = vmul.f32 %v1943, %v1951
        %v1954 = vsub.f32 1.0, %v1952
        %v1955 = vsub.f32 1.0, %v1953
        %vm1956 = vcmp.lt.f32.partialorder %v1914, 0.0
        %vm1957 = vcmp.lt.f32.partialorder %v1915, 0.0
        %v1958 = vsub.f32 0.0, %v1954
        %v1959 = vsub.f32 0.0, %v1955
        %v1960 = vsel %vm1956, %v1958, %v1954
        %v1961 = vsel %vm1957, %v1959, %v1955
        %v1962 = vadd.f32 %v1960, 1.0
        %v1963 = vadd.f32 %v1961, 1.0
        %v1964 = vmul.f32 %v1912, %v1962
        %v1965 = vmul.f32 %v1913, %v1963
        %v1966 = vpack.c.bf16 %v1965, %v1964
        %v1967 = vld [vmem:[%s593] sm:$0xf]
        %v1968 = vld [vmem:[%s593 + $0x4] sm:$0xf]
        %v1969 = vld [vmem:[%s593 + $0x8] sm:$0xf]
        %v1970 = vld [vmem:[%s593 + $0xc] sm:$0xf]
        %v1971 = vld [vmem:[%s593 + $0x10] sm:$0xf]
        %v1972 = vld [vmem:[%s593 + $0x14] sm:$0xf]
        %v1973 = vld [vmem:[%s593 + $0x18] sm:$0xf]
        %v1974 = vld [vmem:[%s593 + $0x1c] sm:$0xf]
        %v1975 = vld [vmem:[%s596] sm:$0x1]
        %v1977 = vlaneseq
        %v1978 = vshrl.u32 %v1977, 7
        %v1979 = vsub.s32 0, %v1978
        %v1980 = vrot.slane %v1975, %v1979
        %v1990 = vunpack.c.l.b16 %v1967
        %v1991 = vunpack.c.l.b16 %v1968
        %v1992 = vunpack.c.l.b16 %v1969
        %v1993 = vunpack.c.l.b16 %v1970
        %v1994 = vunpack.c.l.b16 %v1971
        %v1995 = vunpack.c.l.b16 %v1972
        %v1996 = vunpack.c.l.b16 %v1973
        %v1997 = vunpack.c.l.b16 %v1974
        %v1998 = vpack.c.b16 %v1991, %v1990
        %v1999 = vpack.c.b16 %v1993, %v1992
        %v2000 = vpack.c.b16 %v1995, %v1994
        %v2001 = vpack.c.b16 %v1997, %v1996
        %v2007 = vsel %vm728, %v1966, 0
        %2009 = vmatprep.subr.bf16.mxu0 0
        %2010 = vmatpush1.bf16.msra.mxu0 0
        %2011 = vmatprep.subr.bf16.mxu0 0
        %2012 = vmatpush1.bf16.msra.mxu0 0
        %2013 = vmatprep.subr.bf16.mxu0 0
        %2014 = vmatpush1.bf16.msra.mxu0 0
        %2015 = vmatprep.subr.bf16.mxu0 0
        %2016 = vmatpush1.bf16.msra.mxu0 0
        %2017 = vmatprep.subr.bf16.mxu0 0
        %2018 = vmatpush1.bf16.msra.mxu0 %v2001
        %2019 = vmatprep.subr.bf16.mxu0 0
        %2020 = vmatpush1.bf16.msra.mxu0 %v2000
        %2021 = vmatprep.subr.bf16.mxu0 0
        %2022 = vmatpush1.bf16.msra.mxu0 %v1999
        %2023 = vmatprep.subr.bf16.mxu0 0
        %2024 = vmatpush1.bf16.msra.mxu0 %v1998
        %2025 = vmatprep.subr.bf16.mxu0 0
        %2026 = vmatpush2.bf16.msra.mxu0 0
        %2027 = vmatprep.subr.bf16.mxu0 0
        %2028 = vmatpush2.bf16.msra.mxu0 0
        %2029 = vmatprep.subr.bf16.mxu0 0
        %2030 = vmatpush2.bf16.msra.mxu0 0
        %2031 = vmatprep.subr.bf16.mxu0 0
        %2032 = vmatpush2.bf16.msra.mxu0 0
        %2033 = vmatprep.subr.bf16.mxu0 0
        %2034 = vmatpush2.bf16.msra.mxu0 0
        %2035 = vmatprep.subr.bf16.mxu0 0
        %2036 = vmatpush2.bf16.msra.mxu0 0
        %2037 = vmatprep.subr.bf16.mxu0 0
        %2038 = vmatpush2.bf16.msra.mxu0 0
        %2039 = vmatprep.subr.bf16.mxu0 0
        %2040 = vmatpush2.bf16.msra.mxu0 0
        %2041 = vmatprep.mubr.bf16.mxu0 0
        %2042 = vmatmul.mubr.bf16.gmra.mxu0 %v2007
        %v2043 = vpop.f32.mrf.mxu0
        %v2044 = vadd.f32 %v1980, %v2043
        %v2045 = vpop.f32.mrf.mxu0
        %v2046 = vpop.f32.mrf.mxu0
        %v2047 = vadd.f32 %v1980, %v2046
        %v2048 = vpop.f32.mrf.mxu0
        %2049 = vdwg.mxu0
        %v2050 = vadd.f32 %v1798, %v2044
        %v2051 = vadd.f32 %v1799, %v2047
        %2052 = vst.msk [vmem:[#allocation2] sm:$0xff] %vm612, %v2050
        %2053 = vst.msk [vmem:[#allocation2 + $0x8] sm:$0xff] %vm612, %v2051
        %p2054 = scmp.eq.s32.totalorder %s29, 1
        // Predicated region
        $region73: #{tpu_custom_call.1} parent=67 // pred_check
          %p2055 = pneg %p2054
        $region74: #{tpu_custom_call.1} parent=67 // pred_check_branch
          %2057 = sbr.rel (%p2055) target = $region76
        $region75: #{tpu_custom_call.1} parent=67 // pred_region
          %2058 = vst.msk [vmem:[#allocation5] sm:$0xff] %vm612, %v2050
          %2059 = vst.msk [vmem:[#allocation5 + $0x8] sm:$0xff] %vm612, %v2051
        $region76: #{tpu_custom_call.1} parent=67 // pred_fallthru
          _
        // Predicated region
        $region77: #{tpu_custom_call.1} parent=67 // pred_check
          %p2060 = pneg %p366
        $region78: #{tpu_custom_call.1} parent=67 // pred_check_branch
          %2062 = sbr.rel (%p2060) target = $region80
        $region79: #{tpu_custom_call.1} parent=67 // pred_region
          %s2063 = smul.u32 2, %s28
          %s2065 = ssub.s32 256, 256
          %2066 = vsyncadd [#allocation6], %s2065
          %s2067 = smul.addr %s2063, 128
          %s2068 = scalar_lea.hbm %s12, %s2067
          %s2069 = sshll.u32 [#allocation5], 4
          %s2070 = int_to_ptr.vmem [resolvable:$true] %s2069
          %2075 = dma.vmem_to_hbm [thread:$0]  %s2070, 256, %s2068, [#allocation6], 128, 128, 8
        $region80: #{tpu_custom_call.1} parent=67 // pred_fallthru
          _
        // Predicated region
        $region81: #{tpu_custom_call.1} parent=67 // pred_check
          %p2076 = pneg %p366
        $region82: #{tpu_custom_call.1} parent=67 // pred_check_branch
          %2078 = sbr.rel (%p2076) target = $region84
        $region83: #{tpu_custom_call.1} parent=67 // pred_region
          %2079 = dma.done [#allocation6], 256
        $region84: #{tpu_custom_call.1} parent=67 // pred_fallthru
          _
      $region68: #{tpu_custom_call.1} parent=5 // pred_fallthru
        _
      %p2080 = scmp.le.s32.totalorder 2, %s19
      // Predicated region
      $region85: #{tpu_custom_call.1} parent=5 // pred_check
        %p2081 = pneg %p2080
      $region86: #{tpu_custom_call.1} parent=5 // pred_check_branch
        %2083 = sbr.rel (%p2081) target = $region88
      $region87: #{tpu_custom_call.1} parent=5 // pred_region
        %s2084 = ssub.s32 %s19, 2
      $region88: #{tpu_custom_call.1} parent=5 // pred_fallthru
        _
    $region6: #{tpu_custom_call.1} parent=1 // loop_footer
      %s23 = sadd.s32 1, %s19
    $region7: #{tpu_custom_call.1} parent=1 // loop_footer_branch
      %18 = sbr.rel target = $region3
    $region8: #{tpu_custom_call.1} parent=1 // loop_exit
      _
    %2085 = vsyncpa [#allocation6], 1
    %s2086 = scalar_lea.sflag [#allocation6], 1
    %2087 = vsyncpa %s2086, 1

</llo_original>
